<compile_context>
chip_gen: v7x
topology: tpu7x:2x2x1
jax: 0.10.0
libtpu: 0.0.40
codegen_flags: <defaults>
</compile_context>

<pallas_src>
import math
import jax
import jax.numpy as jnp
from jax.experimental import pallas as pl
from jax.experimental.pallas import tpu as pltpu


def _round_up(n, m):
    return ((n + m - 1) // m) * m


def _ceil_div(a, b):
    return -(-a // b)


def _layer_sizes(inputsize):
    # CICIDS2018_FC layer widths from the PyTorch spec.
    return [inputsize, 100, 250, 500, 200, 50, 10, 1]


def _mlp_kernel(x_ref,
                w1, b1, w2, b2, w3, b3, w4, b4, w5, b5, w6, b6, w7, b7,
                o_ref):
    # 7 chained matmuls, all operands VMEM-resident for the current batch tile.
    def linear(h_bf16, w_ref, b_ref):
        return jnp.dot(h_bf16, w_ref[...],
                       preferred_element_type=jnp.float32) + b_ref[...]

    h = x_ref[...].astype(jnp.bfloat16)
    for (w, b) in ((w1, b1), (w2, b2), (w3, b3),
                   (w4, b4), (w5, b5), (w6, b6)):
        # f32 accumulate + bias + ReLU, then back to bf16 for the next MXU op.
        h = jnp.maximum(linear(h, w, b), 0.0).astype(jnp.bfloat16)
    # Only column 0 of the final (padded-to-128) layer is real: do the sigmoid
    # math (EUP exp + approx reciprocal) and the store on the (tb, 1) slice.
    logits = linear(h, w7, b7)[:, :1]
    o_ref[...] = pl.reciprocal(1.0 + jnp.exp(-logits), approx=True)


def init_params(inputsize, key):
    """Xavier-uniform weights / zero biases (matches the PyTorch Xavier init),
    padded to lane-aligned widths.  Weights bf16, biases f32."""
    sizes = _layer_sizes(inputsize)
    params = []
    for i in range(len(sizes) - 1):
        fan_in, fan_out = sizes[i], sizes[i + 1]
        std = math.sqrt(2.0 / (fan_in + fan_out))
        a = math.sqrt(3.0) * std
        key, sub = jax.random.split(key)
        # Stored as (fan_in, fan_out): kernel computes x @ W + b, i.e. the
        # transpose of PyTorch's (out, in) layout.
        w = jax.random.uniform(sub, (fan_in, fan_out), jnp.float32, -a, a)
        # Layer 0 keeps its K dim unpadded (x is passed as a full block);
        # hidden/output widths padded to multiples of 128 (padding is inert:
        # zero rows/cols + ReLU(0)=0; the kernel reads only logits[:, :1]).
        pi = fan_in if i == 0 else _round_up(fan_in, 128)
        po = _round_up(fan_out, 128)
        w_pad = jnp.zeros((pi, po), jnp.float32).at[:fan_in, :fan_out].set(w)
        b_pad = jnp.zeros((1, po), jnp.float32)  # Xavier fills bias with 0
        params.append((w_pad.astype(jnp.bfloat16), b_pad))
    return params


def cicids2018_fc_forward(x, params, inputsize, *, block_b=2048):
    """x: (B, inputsize) float32  ->  (B, 1) float32 (sigmoid output)."""
    B = x.shape[0]

    # Adaptive batch tiling: split B into near-equal tiles (multiple of 16 for
    # bf16 sublane packing).  Mid/large batches get >= 2 tiles so both v7x
    # TensorCores are used; padding waste is < 16 rows per tile.
    n_tiles = max(1, _ceil_div(B, block_b))
    if n_tiles == 1 and B >= 256:
        n_tiles = 2
    tb = _round_up(_ceil_div(B, n_tiles), 16)
    b_pad = tb * n_tiles
    if b_pad != B:
        x = jnp.zeros((b_pad, inputsize), x.dtype).at[:B].set(x)

    grid = (n_tiles,)

    flat_args = [x]
    in_specs = [pl.BlockSpec((tb, inputsize), lambda i: (i, 0))]
    for (w, b) in params:
        flat_args += [w, b]
        # Weights/biases: same block every grid step -> stay VMEM-resident.
        in_specs += [pl.BlockSpec(w.shape, lambda i: (0, 0)),
                     pl.BlockSpec(b.shape, lambda i: (0, 0))]

    flops = 2 * b_pad * sum(int(w.shape[0]) * int(w.shape[1]) for w, _ in params)
    bytes_accessed = (x.size * x.dtype.itemsize
                      + sum(w.size * 2 + b.size * 4 for w, b in params)
                      + b_pad * 1 * 4)

    out = pl.pallas_call(
        _mlp_kernel,
        out_shape=jax.ShapeDtypeStruct((b_pad, 1), jnp.float32),
        grid=grid,
        in_specs=in_specs,
        # (tb, 1) block: last dim equals the full array dim -> legal; the
        # narrow masked store volume is trivial (4 B/row).
        out_specs=pl.BlockSpec((tb, 1), lambda i: (i, 0)),
        compiler_params=pltpu.CompilerParams(
            dimension_semantics=("parallel",),
            vmem_limit_bytes=32 * 1024 * 1024),
        cost_estimate=pl.CostEstimate(
            flops=flops,
            transcendentals=b_pad,
            bytes_accessed=bytes_accessed),
    )(*flat_args)

    return out[:B]


def _reference_forward(x, params, inputsize):
    """Pure-JAX reference (f32 math on the same bf16 weights)."""
    sizes = _layer_sizes(inputsize)
    h = x
    for i, (w, b) in enumerate(params):
        fan_in, fan_out = sizes[i], sizes[i + 1]
        w_f32 = w.astype(jnp.float32)[:fan_in, :fan_out]
        b_f32 = b[0, :fan_out]
        h = h @ w_f32 + b_f32
        if i < len(params) - 1:
            h = jnp.maximum(h, 0.0)
    return jax.nn.sigmoid(h)


if __name__ == "__main__":
    INPUTSIZE = 32   # small synthetic feature count
    BATCH = 8

    key = jax.random.PRNGKey(0)
    k_params, k_x = jax.random.split(key)

    params = init_params(INPUTSIZE, k_params)
    x = jax.random.normal(k_x, (BATCH, INPUTSIZE), jnp.float32)

    y = cicids2018_fc_forward(x, params, INPUTSIZE)
    y = jax.block_until_ready(y)

    assert y.shape == (BATCH, 1)
    assert bool(jnp.all((y >= 0.0) & (y <= 1.0)))

    y_ref = _reference_forward(x, params, INPUTSIZE)
    assert bool(jnp.all(jnp.abs(y - y_ref) < 5e-2)), "mismatch vs reference"

    print("KERNEL_OK")
</pallas_src>

<mosaic_0001>
module attributes {stable_mosaic.version = 11 : i64} {
  func.func @_mlp_kernel(%arg0: i32, %arg1: memref<16x32xf32, #tpu.memory_space<vmem>>, %arg2: memref<32x128xbf16, #tpu.memory_space<vmem>>, %arg3: memref<1x128xf32, #tpu.memory_space<vmem>>, %arg4: memref<128x256xbf16, #tpu.memory_space<vmem>>, %arg5: memref<1x256xf32, #tpu.memory_space<vmem>>, %arg6: memref<256x512xbf16, #tpu.memory_space<vmem>>, %arg7: memref<1x512xf32, #tpu.memory_space<vmem>>, %arg8: memref<512x256xbf16, #tpu.memory_space<vmem>>, %arg9: memref<1x256xf32, #tpu.memory_space<vmem>>, %arg10: memref<256x128xbf16, #tpu.memory_space<vmem>>, %arg11: memref<1x128xf32, #tpu.memory_space<vmem>>, %arg12: memref<128x128xbf16, #tpu.memory_space<vmem>>, %arg13: memref<1x128xf32, #tpu.memory_space<vmem>>, %arg14: memref<128x128xbf16, #tpu.memory_space<vmem>>, %arg15: memref<1x128xf32, #tpu.memory_space<vmem>>, %arg16: memref<16x1xf32, #tpu.memory_space<vmem>>) attributes {dimension_semantics = [#tpu.dimension_semantics<parallel>], iteration_bounds = array<i64: 1>, scalar_prefetch = 0 : i64, scratch_operands = 0 : i64, tpu.core_type = #tpu.core_type<tc>, window_params = [{transform_indices = @transform_0, window_bounds = array<i64: 16, 32>}, {pipeline_mode = #tpu.pipeline_mode<synchronous>, transform_indices = @transform_1, window_bounds = array<i64: 32, 128>}, {pipeline_mode = #tpu.pipeline_mode<synchronous>, transform_indices = @transform_2, window_bounds = array<i64: 1, 128>}, {pipeline_mode = #tpu.pipeline_mode<synchronous>, transform_indices = @transform_3, window_bounds = array<i64: 128, 256>}, {pipeline_mode = #tpu.pipeline_mode<synchronous>, transform_indices = @transform_4, window_bounds = array<i64: 1, 256>}, {pipeline_mode = #tpu.pipeline_mode<synchronous>, transform_indices = @transform_5, window_bounds = array<i64: 256, 512>}, {pipeline_mode = #tpu.pipeline_mode<synchronous>, transform_indices = @transform_6, window_bounds = array<i64: 1, 512>}, {pipeline_mode = #tpu.pipeline_mode<synchronous>, transform_indices = @transform_7, window_bounds = array<i64: 512, 256>}, {pipeline_mode = #tpu.pipeline_mode<synchronous>, transform_indices = @transform_8, window_bounds = array<i64: 1, 256>}, {pipeline_mode = #tpu.pipeline_mode<synchronous>, transform_indices = @transform_9, window_bounds = array<i64: 256, 128>}, {pipeline_mode = #tpu.pipeline_mode<synchronous>, transform_indices = @transform_10, window_bounds = array<i64: 1, 128>}, {pipeline_mode = #tpu.pipeline_mode<synchronous>, transform_indices = @transform_11, window_bounds = array<i64: 128, 128>}, {pipeline_mode = #tpu.pipeline_mode<synchronous>, transform_indices = @transform_12, window_bounds = array<i64: 1, 128>}, {pipeline_mode = #tpu.pipeline_mode<synchronous>, transform_indices = @transform_13, window_bounds = array<i64: 128, 128>}, {pipeline_mode = #tpu.pipeline_mode<synchronous>, transform_indices = @transform_14, window_bounds = array<i64: 1, 128>}, {transform_indices = @transform_15, window_bounds = array<i64: 16, 1>}]} {
    %c0 = arith.constant 0 : index
    %c0_0 = arith.constant 0 : index
    %0 = vector.load %arg1[%c0, %c0_0] : memref<16x32xf32, #tpu.memory_space<vmem>>, vector<16x32xf32>
    %1 = arith.truncf %0 : vector<16x32xf32> to vector<16x32xbf16>
    %c0_1 = arith.constant 0 : index
    %c0_2 = arith.constant 0 : index
    %2 = vector.load %arg2[%c0_1, %c0_2] : memref<32x128xbf16, #tpu.memory_space<vmem>>, vector<32x128xbf16>
    %cst = arith.constant dense<0.000000e+00> : vector<16x128xf32>
    %3 = tpu.matmul %1, %2, %cst {dimension_numbers = #tpu.dot_dimension_numbers<[1], [0], [0], [1], [0, 0, 1, 1], [], []>} : vector<16x32xbf16>, vector<32x128xbf16>, vector<16x128xf32> -> vector<16x128xf32>
    %c0_3 = arith.constant 0 : index
    %c0_4 = arith.constant 0 : index
    %4 = vector.load %arg3[%c0_3, %c0_4] : memref<1x128xf32, #tpu.memory_space<vmem>>, vector<1x128xf32>
    %5 = vector.broadcast %4 : vector<1x128xf32> to vector<16x128xf32>
    %6 = arith.addf %3, %5 : vector<16x128xf32>
    %cst_5 = arith.constant 0.000000e+00 : f32
    %7 = vector.broadcast %cst_5 : f32 to vector<16x128xf32>
    %8 = arith.maximumf %6, %7 : vector<16x128xf32>
    %9 = arith.truncf %8 : vector<16x128xf32> to vector<16x128xbf16>
    %c0_6 = arith.constant 0 : index
    %c0_7 = arith.constant 0 : index
    %10 = vector.load %arg4[%c0_6, %c0_7] : memref<128x256xbf16, #tpu.memory_space<vmem>>, vector<128x256xbf16>
    %cst_8 = arith.constant dense<0.000000e+00> : vector<16x256xf32>
    %11 = tpu.matmul %9, %10, %cst_8 {dimension_numbers = #tpu.dot_dimension_numbers<[1], [0], [0], [1], [0, 0, 1, 1], [], []>} : vector<16x128xbf16>, vector<128x256xbf16>, vector<16x256xf32> -> vector<16x256xf32>
    %c0_9 = arith.constant 0 : index
    %c0_10 = arith.constant 0 : index
    %12 = vector.load %arg5[%c0_9, %c0_10] : memref<1x256xf32, #tpu.memory_space<vmem>>, vector<1x256xf32>
    %13 = vector.broadcast %12 : vector<1x256xf32> to vector<16x256xf32>
    %14 = arith.addf %11, %13 : vector<16x256xf32>
    %cst_11 = arith.constant 0.000000e+00 : f32
    %15 = vector.broadcast %cst_11 : f32 to vector<16x256xf32>
    %16 = arith.maximumf %14, %15 : vector<16x256xf32>
    %17 = arith.truncf %16 : vector<16x256xf32> to vector<16x256xbf16>
    %c0_12 = arith.constant 0 : index
    %c0_13 = arith.constant 0 : index
    %18 = vector.load %arg6[%c0_12, %c0_13] : memref<256x512xbf16, #tpu.memory_space<vmem>>, vector<256x512xbf16>
    %cst_14 = arith.constant dense<0.000000e+00> : vector<16x512xf32>
    %19 = tpu.matmul %17, %18, %cst_14 {dimension_numbers = #tpu.dot_dimension_numbers<[1], [0], [0], [1], [0, 0, 1, 1], [], []>} : vector<16x256xbf16>, vector<256x512xbf16>, vector<16x512xf32> -> vector<16x512xf32>
    %c0_15 = arith.constant 0 : index
    %c0_16 = arith.constant 0 : index
    %20 = vector.load %arg7[%c0_15, %c0_16] : memref<1x512xf32, #tpu.memory_space<vmem>>, vector<1x512xf32>
    %21 = vector.broadcast %20 : vector<1x512xf32> to vector<16x512xf32>
    %22 = arith.addf %19, %21 : vector<16x512xf32>
    %cst_17 = arith.constant 0.000000e+00 : f32
    %23 = vector.broadcast %cst_17 : f32 to vector<16x512xf32>
    %24 = arith.maximumf %22, %23 : vector<16x512xf32>
    %25 = arith.truncf %24 : vector<16x512xf32> to vector<16x512xbf16>
    %c0_18 = arith.constant 0 : index
    %c0_19 = arith.constant 0 : index
    %26 = vector.load %arg8[%c0_18, %c0_19] : memref<512x256xbf16, #tpu.memory_space<vmem>>, vector<512x256xbf16>
    %cst_20 = arith.constant dense<0.000000e+00> : vector<16x256xf32>
    %27 = tpu.matmul %25, %26, %cst_20 {dimension_numbers = #tpu.dot_dimension_numbers<[1], [0], [0], [1], [0, 0, 1, 1], [], []>} : vector<16x512xbf16>, vector<512x256xbf16>, vector<16x256xf32> -> vector<16x256xf32>
    %c0_21 = arith.constant 0 : index
    %c0_22 = arith.constant 0 : index
    %28 = vector.load %arg9[%c0_21, %c0_22] : memref<1x256xf32, #tpu.memory_space<vmem>>, vector<1x256xf32>
    %29 = vector.broadcast %28 : vector<1x256xf32> to vector<16x256xf32>
    %30 = arith.addf %27, %29 : vector<16x256xf32>
    %cst_23 = arith.constant 0.000000e+00 : f32
    %31 = vector.broadcast %cst_23 : f32 to vector<16x256xf32>
    %32 = arith.maximumf %30, %31 : vector<16x256xf32>
    %33 = arith.truncf %32 : vector<16x256xf32> to vector<16x256xbf16>
    %c0_24 = arith.constant 0 : index
    %c0_25 = arith.constant 0 : index
    %34 = vector.load %arg10[%c0_24, %c0_25] : memref<256x128xbf16, #tpu.memory_space<vmem>>, vector<256x128xbf16>
    %cst_26 = arith.constant dense<0.000000e+00> : vector<16x128xf32>
    %35 = tpu.matmul %33, %34, %cst_26 {dimension_numbers = #tpu.dot_dimension_numbers<[1], [0], [0], [1], [0, 0, 1, 1], [], []>} : vector<16x256xbf16>, vector<256x128xbf16>, vector<16x128xf32> -> vector<16x128xf32>
    %c0_27 = arith.constant 0 : index
    %c0_28 = arith.constant 0 : index
    %36 = vector.load %arg11[%c0_27, %c0_28] : memref<1x128xf32, #tpu.memory_space<vmem>>, vector<1x128xf32>
    %37 = vector.broadcast %36 : vector<1x128xf32> to vector<16x128xf32>
    %38 = arith.addf %35, %37 : vector<16x128xf32>
    %cst_29 = arith.constant 0.000000e+00 : f32
    %39 = vector.broadcast %cst_29 : f32 to vector<16x128xf32>
    %40 = arith.maximumf %38, %39 : vector<16x128xf32>
    %41 = arith.truncf %40 : vector<16x128xf32> to vector<16x128xbf16>
    %c0_30 = arith.constant 0 : index
    %c0_31 = arith.constant 0 : index
    %42 = vector.load %arg12[%c0_30, %c0_31] : memref<128x128xbf16, #tpu.memory_space<vmem>>, vector<128x128xbf16>
    %cst_32 = arith.constant dense<0.000000e+00> : vector<16x128xf32>
    %43 = tpu.matmul %41, %42, %cst_32 {dimension_numbers = #tpu.dot_dimension_numbers<[1], [0], [0], [1], [0, 0, 1, 1], [], []>} : vector<16x128xbf16>, vector<128x128xbf16>, vector<16x128xf32> -> vector<16x128xf32>
    %c0_33 = arith.constant 0 : index
    %c0_34 = arith.constant 0 : index
    %44 = vector.load %arg13[%c0_33, %c0_34] : memref<1x128xf32, #tpu.memory_space<vmem>>, vector<1x128xf32>
    %45 = vector.broadcast %44 : vector<1x128xf32> to vector<16x128xf32>
    %46 = arith.addf %43, %45 : vector<16x128xf32>
    %cst_35 = arith.constant 0.000000e+00 : f32
    %47 = vector.broadcast %cst_35 : f32 to vector<16x128xf32>
    %48 = arith.maximumf %46, %47 : vector<16x128xf32>
    %49 = arith.truncf %48 : vector<16x128xf32> to vector<16x128xbf16>
    %c0_36 = arith.constant 0 : index
    %c0_37 = arith.constant 0 : index
    %50 = vector.load %arg14[%c0_36, %c0_37] : memref<128x128xbf16, #tpu.memory_space<vmem>>, vector<128x128xbf16>
    %cst_38 = arith.constant dense<0.000000e+00> : vector<16x128xf32>
    %51 = tpu.matmul %49, %50, %cst_38 {dimension_numbers = #tpu.dot_dimension_numbers<[1], [0], [0], [1], [0, 0, 1, 1], [], []>} : vector<16x128xbf16>, vector<128x128xbf16>, vector<16x128xf32> -> vector<16x128xf32>
    %c0_39 = arith.constant 0 : index
    %c0_40 = arith.constant 0 : index
    %52 = vector.load %arg15[%c0_39, %c0_40] : memref<1x128xf32, #tpu.memory_space<vmem>>, vector<1x128xf32>
    %53 = vector.broadcast %52 : vector<1x128xf32> to vector<16x128xf32>
    %54 = arith.addf %51, %53 : vector<16x128xf32>
    %55 = vector.extract_strided_slice %54 {offsets = [0, 0], sizes = [16, 1], strides = [1, 1]} : vector<16x128xf32> to vector<16x1xf32>
    %cst_41 = arith.constant 0.000000e+00 : f32
    %56 = vector.broadcast %cst_41 : f32 to vector<16x1xf32>
    %57 = arith.subf %56, %55 : vector<16x1xf32>
    %58 = math.exp %57 : vector<16x1xf32>
    %cst_42 = arith.constant 1.000000e+00 : f32
    %59 = vector.broadcast %cst_42 : f32 to vector<16x1xf32>
    %60 = arith.addf %59, %58 : vector<16x1xf32>
    %61 = tpu.reciprocal %60 {approx = true} : vector<16x1xf32> -> vector<16x1xf32>
    %c0_43 = arith.constant 0 : index
    %c0_44 = arith.constant 0 : index
    %62 = vector.load %arg16[%c0_43, %c0_44] : memref<16x1xf32, #tpu.memory_space<vmem>>, vector<16x1xf32>
    tpu.vector_store %arg16[%c0_43, %c0_44], %61 {strides = array<i32>} : memref<16x1xf32, #tpu.memory_space<vmem>>, vector<16x1xf32>,
    return
  }
  func.func @transform_0(%arg0: i32) -> (i32, i32) {
    %c0_i32 = arith.constant 0 : i32
    %c0_i32_0 = arith.constant 0 : i32
    return %arg0, %c0_i32 : i32, i32
  }
  func.func @transform_1(%arg0: i32) -> (i32, i32) {
    %c0_i32 = arith.constant 0 : i32
    %c0_i32_0 = arith.constant 0 : i32
    %c0_i32_1 = arith.constant 0 : i32
    return %c0_i32, %c0_i32_0 : i32, i32
  }
  func.func @transform_2(%arg0: i32) -> (i32, i32) {
    %c0_i32 = arith.constant 0 : i32
    %c0_i32_0 = arith.constant 0 : i32
    %c0_i32_1 = arith.constant 0 : i32
    return %c0_i32, %c0_i32_0 : i32, i32
  }
  func.func @transform_3(%arg0: i32) -> (i32, i32) {
    %c0_i32 = arith.constant 0 : i32
    %c0_i32_0 = arith.constant 0 : i32
    %c0_i32_1 = arith.constant 0 : i32
    return %c0_i32, %c0_i32_0 : i32, i32
  }
  func.func @transform_4(%arg0: i32) -> (i32, i32) {
    %c0_i32 = arith.constant 0 : i32
    %c0_i32_0 = arith.constant 0 : i32
    %c0_i32_1 = arith.constant 0 : i32
    return %c0_i32, %c0_i32_0 : i32, i32
  }
  func.func @transform_5(%arg0: i32) -> (i32, i32) {
    %c0_i32 = arith.constant 0 : i32
    %c0_i32_0 = arith.constant 0 : i32
    %c0_i32_1 = arith.constant 0 : i32
    return %c0_i32, %c0_i32_0 : i32, i32
  }
  func.func @transform_6(%arg0: i32) -> (i32, i32) {
    %c0_i32 = arith.constant 0 : i32
    %c0_i32_0 = arith.constant 0 : i32
    %c0_i32_1 = arith.constant 0 : i32
    return %c0_i32, %c0_i32_0 : i32, i32
  }
  func.func @transform_7(%arg0: i32) -> (i32, i32) {
    %c0_i32 = arith.constant 0 : i32
    %c0_i32_0 = arith.constant 0 : i32
    %c0_i32_1 = arith.constant 0 : i32
    return %c0_i32, %c0_i32_0 : i32, i32
  }
  func.func @transform_8(%arg0: i32) -> (i32, i32) {
    %c0_i32 = arith.constant 0 : i32
    %c0_i32_0 = arith.constant 0 : i32
    %c0_i32_1 = arith.constant 0 : i32
    return %c0_i32, %c0_i32_0 : i32, i32
  }
  func.func @transform_9(%arg0: i32) -> (i32, i32) {
    %c0_i32 = arith.constant 0 : i32
    %c0_i32_0 = arith.constant 0 : i32
    %c0_i32_1 = arith.constant 0 : i32
    return %c0_i32, %c0_i32_0 : i32, i32
  }
  func.func @transform_10(%arg0: i32) -> (i32, i32) {
    %c0_i32 = arith.constant 0 : i32
    %c0_i32_0 = arith.constant 0 : i32
    %c0_i32_1 = arith.constant 0 : i32
    return %c0_i32, %c0_i32_0 : i32, i32
  }
  func.func @transform_11(%arg0: i32) -> (i32, i32) {
    %c0_i32 = arith.constant 0 : i32
    %c0_i32_0 = arith.constant 0 : i32
    %c0_i32_1 = arith.constant 0 : i32
    return %c0_i32, %c0_i32_0 : i32, i32
  }
  func.func @transform_12(%arg0: i32) -> (i32, i32) {
    %c0_i32 = arith.constant 0 : i32
    %c0_i32_0 = arith.constant 0 : i32
    %c0_i32_1 = arith.constant 0 : i32
    return %c0_i32, %c0_i32_0 : i32, i32
  }
  func.func @transform_13(%arg0: i32) -> (i32, i32) {
    %c0_i32 = arith.constant 0 : i32
    %c0_i32_0 = arith.constant 0 : i32
    %c0_i32_1 = arith.constant 0 : i32
    return %c0_i32, %c0_i32_0 : i32, i32
  }
  func.func @transform_14(%arg0: i32) -> (i32, i32) {
    %c0_i32 = arith.constant 0 : i32
    %c0_i32_0 = arith.constant 0 : i32
    %c0_i32_1 = arith.constant 0 : i32
    return %c0_i32, %c0_i32_0 : i32, i32
  }
  func.func @transform_15(%arg0: i32) -> (i32, i32) {
    %c0_i32 = arith.constant 0 : i32
    %c0_i32_0 = arith.constant 0 : i32
    return %arg0, %c0_i32 : i32, i32
  }
}

</mosaic_0001>

<llo_original>
// kernel: tpu_custom_call.1
$region0: #{tpu_custom_call.1}
  #allocation0 [shape = 'u32[]', space=smem, size = 0x4, offset = 0x4, fixed_abs, tag = 'smem constant byte address 0x4 - core index']
  #allocation1 [shape = 'u32[144,128]{1,0:T(1,128)}', space=vmem, size = 0x12000, scoped, tag = 'internal scratch']
  %s0 = inlined_call_operand.hbm [shape: f32[16,32], index: 0, kind: input, shape index: {}]
  %s1 = inlined_call_operand.hbm [shape: bf16[32,128], index: 1, kind: input, shape index: {}]
  %s2 = inlined_call_operand.vmem [shape: f32[1,128], index: 2, kind: input, shape index: {}]
  %s3 = inlined_call_operand.hbm [shape: bf16[128,256], index: 3, kind: input, shape index: {}]
  %s4 = inlined_call_operand.vmem [shape: f32[1,256], index: 4, kind: input, shape index: {}]
  %s5 = inlined_call_operand.hbm [shape: bf16[256,512], index: 5, kind: input, shape index: {}]
  %s6 = inlined_call_operand.vmem [shape: f32[1,512], index: 6, kind: input, shape index: {}]
  %s7 = inlined_call_operand.hbm [shape: bf16[512,256], index: 7, kind: input, shape index: {}]
  %s8 = inlined_call_operand.vmem [shape: f32[1,256], index: 8, kind: input, shape index: {}]
  %s9 = inlined_call_operand.hbm [shape: bf16[256,128], index: 9, kind: input, shape index: {}]
  %s10 = inlined_call_operand.vmem [shape: f32[1,128], index: 10, kind: input, shape index: {}]
  %s11 = inlined_call_operand.hbm [shape: bf16[128,128], index: 11, kind: input, shape index: {}]
  %s12 = inlined_call_operand.vmem [shape: f32[1,128], index: 12, kind: input, shape index: {}]
  %s13 = inlined_call_operand.hbm [shape: bf16[128,128], index: 13, kind: input, shape index: {}]
  %s14 = inlined_call_operand.vmem [shape: f32[1,128], index: 14, kind: input, shape index: {}]
  %s15 = inlined_call_operand.vmem [shape: f32[16,1], index: 15, kind: output, shape index: {}]
  %s16 = sld [smem:[#allocation0]]
  $region102: #{tpu_custom_call.1} parent=0
    _
  %s18 = ssub.s32 1, %s16
  %s19 = scalar_select 0, %s18, %s16
  $region1: #{tpu_custom_call.1} parent=0
    #allocation2 [shape = 'u8[8192]{0}', space=vmem, size = 0x2000, scoped, tag = 'input window, operand 0, single buffered']
    #allocation3 [shape = 's32[1]{0}', space=sflag, size = 0x4, scoped, tag = 'scoped memory for tpu_custom_call.1']
    #allocation4 [shape = 'u8[8192]{0}', space=vmem, size = 0x2000, scoped, tag = 'input window, operand 1, single buffered']
    #allocation5 [shape = 's32[1]{0}', space=sflag, size = 0x4, scoped, tag = 'scoped memory for tpu_custom_call.1']
    #allocation6 [shape = 'u8[65536]{0}', space=vmem, size = 0x10000, scoped, tag = 'input window, operand 3, single buffered']
    #allocation7 [shape = 'u8[262144]{0}', space=vmem, size = 0x40000, scoped, tag = 'input window, operand 5, single buffered']
    #allocation8 [shape = 's32[1]{0}', space=sflag, size = 0x4, scoped, tag = 'scoped memory for tpu_custom_call.1']
    #allocation9 [shape = 'u8[262144]{0}', space=vmem, size = 0x40000, scoped, tag = 'input window, operand 7, single buffered']
    #allocation10 [shape = 'u8[65536]{0}', space=vmem, size = 0x10000, scoped, tag = 'input window, operand 9, single buffered']
    #allocation11 [shape = 's32[1]{0}', space=sflag, size = 0x4, scoped, tag = 'scoped memory for tpu_custom_call.1']
    #allocation12 [shape = 'u8[32768]{0}', space=vmem, size = 0x8000, scoped, tag = 'input window, operand 11, single buffered']
    #allocation13 [shape = 'u8[32768]{0}', space=vmem, size = 0x8000, scoped, tag = 'input window, operand 13, single buffered']
    #allocation14 [shape = 's32[1]{0}', space=sflag, size = 0x4, scoped, tag = 'scoped memory for tpu_custom_call.1']
    %20 = vsyncpa [#allocation3], 0
    %21 = vsyncpa [#allocation5], 0
    %22 = vsyncpa [#allocation8], 0
    %23 = vsyncpa [#allocation11], 0
    %24 = vsyncpa [#allocation14], 0
    // Predicated region
    $region2: #{tpu_custom_call.1} parent=1 // pred_check
      _
    $region3: #{tpu_custom_call.1} parent=1 // pred_check_branch
      %26 = sbr.rel (0) target = $region5
    $region4: #{tpu_custom_call.1} parent=1 // pred_region
      %s28 = ssub.s32 256, 256
      %29 = vsyncadd [#allocation3], %s28
      %s30 = sshll.u32 [#allocation2], 4
      %s31 = int_to_ptr.vmem [resolvable:$true] %s30
      %36 = dma.hbm_to_vmem [thread:$0]  %s0, 256, %s31, [#allocation3], 128, 128, 8
    $region5: #{tpu_custom_call.1} parent=1 // pred_fallthru
      _
    // Predicated region
    $region6: #{tpu_custom_call.1} parent=1 // pred_check
      _
    $region7: #{tpu_custom_call.1} parent=1 // pred_check_branch
      %38 = sbr.rel (0) target = $region9
    $region8: #{tpu_custom_call.1} parent=1 // pred_region
      %s40 = ssub.s32 256, 256
      %41 = vsyncadd [#allocation5], %s40
      %s42 = sshll.u32 [#allocation4], 4
      %s43 = int_to_ptr.vmem [resolvable:$true] %s42
      %48 = dma.hbm_to_vmem [thread:$0]  %s1, 256, %s43, [#allocation5], 64, 64, 4
    $region9: #{tpu_custom_call.1} parent=1 // pred_fallthru
      _
    // Predicated region
    $region10: #{tpu_custom_call.1} parent=1 // pred_check
      _
    $region11: #{tpu_custom_call.1} parent=1 // pred_check_branch
      %50 = sbr.rel (0) target = $region13
    $region12: #{tpu_custom_call.1} parent=1 // pred_region
      _
    $region13: #{tpu_custom_call.1} parent=1 // pred_fallthru
      _
    // Predicated region
    $region14: #{tpu_custom_call.1} parent=1 // pred_check
      _
    $region15: #{tpu_custom_call.1} parent=1 // pred_check_branch
      %52 = sbr.rel (0) target = $region17
    $region16: #{tpu_custom_call.1} parent=1 // pred_region
      %s54 = ssub.s32 2048, 2048
      %55 = vsyncadd [#allocation5], %s54
      %s56 = sshll.u32 [#allocation6], 4
      %s57 = int_to_ptr.vmem [resolvable:$true] %s56
      %62 = dma.hbm_to_vmem [thread:$0]  %s3, 2048, %s57, [#allocation5], 128, 128, 8
    $region17: #{tpu_custom_call.1} parent=1 // pred_fallthru
      _
    // Predicated region
    $region18: #{tpu_custom_call.1} parent=1 // pred_check
      _
    $region19: #{tpu_custom_call.1} parent=1 // pred_check_branch
      %64 = sbr.rel (0) target = $region21
    $region20: #{tpu_custom_call.1} parent=1 // pred_region
      _
    $region21: #{tpu_custom_call.1} parent=1 // pred_fallthru
      _
    // Predicated region
    $region22: #{tpu_custom_call.1} parent=1 // pred_check
      _
    $region23: #{tpu_custom_call.1} parent=1 // pred_check_branch
      %66 = sbr.rel (0) target = $region25
    $region24: #{tpu_custom_call.1} parent=1 // pred_region
      %s68 = ssub.s32 8192, 8192
      %69 = vsyncadd [#allocation8], %s68
      %s70 = sshll.u32 [#allocation7], 4
      %s71 = int_to_ptr.vmem [resolvable:$true] %s70
      %76 = dma.hbm_to_vmem [thread:$0]  %s5, 8192, %s71, [#allocation8], 256, 256, 16
    $region25: #{tpu_custom_call.1} parent=1 // pred_fallthru
      _
    // Predicated region
    $region26: #{tpu_custom_call.1} parent=1 // pred_check
      _
    $region27: #{tpu_custom_call.1} parent=1 // pred_check_branch
      %78 = sbr.rel (0) target = $region29
    $region28: #{tpu_custom_call.1} parent=1 // pred_region
      _
    $region29: #{tpu_custom_call.1} parent=1 // pred_fallthru
      _
    // Predicated region
    $region30: #{tpu_custom_call.1} parent=1 // pred_check
      _
    $region31: #{tpu_custom_call.1} parent=1 // pred_check_branch
      %80 = sbr.rel (0) target = $region33
    $region32: #{tpu_custom_call.1} parent=1 // pred_region
      %s82 = ssub.s32 8192, 8192
      %83 = vsyncadd [#allocation8], %s82
      %s84 = sshll.u32 [#allocation9], 4
      %s85 = int_to_ptr.vmem [resolvable:$true] %s84
      %90 = dma.hbm_to_vmem [thread:$0]  %s7, 8192, %s85, [#allocation8], 128, 128, 8
    $region33: #{tpu_custom_call.1} parent=1 // pred_fallthru
      _
    // Predicated region
    $region34: #{tpu_custom_call.1} parent=1 // pred_check
      _
    $region35: #{tpu_custom_call.1} parent=1 // pred_check_branch
      %92 = sbr.rel (0) target = $region37
    $region36: #{tpu_custom_call.1} parent=1 // pred_region
      _
    $region37: #{tpu_custom_call.1} parent=1 // pred_fallthru
      _
    // Predicated region
    $region38: #{tpu_custom_call.1} parent=1 // pred_check
      _
    $region39: #{tpu_custom_call.1} parent=1 // pred_check_branch
      %94 = sbr.rel (0) target = $region41
    $region40: #{tpu_custom_call.1} parent=1 // pred_region
      %s96 = ssub.s32 2048, 2048
      %97 = vsyncadd [#allocation11], %s96
      %s98 = sshll.u32 [#allocation10], 4
      %s99 = int_to_ptr.vmem [resolvable:$true] %s98
      %104 = dma.hbm_to_vmem [thread:$0]  %s9, 2048, %s99, [#allocation11], 64, 64, 4
    $region41: #{tpu_custom_call.1} parent=1 // pred_fallthru
      _
    // Predicated region
    $region42: #{tpu_custom_call.1} parent=1 // pred_check
      _
    $region43: #{tpu_custom_call.1} parent=1 // pred_check_branch
      %106 = sbr.rel (0) target = $region45
    $region44: #{tpu_custom_call.1} parent=1 // pred_region
      _
    $region45: #{tpu_custom_call.1} parent=1 // pred_fallthru
      _
    // Predicated region
    $region46: #{tpu_custom_call.1} parent=1 // pred_check
      _
    $region47: #{tpu_custom_call.1} parent=1 // pred_check_branch
      %108 = sbr.rel (0) target = $region49
    $region48: #{tpu_custom_call.1} parent=1 // pred_region
      %s110 = ssub.s32 1024, 1024
      %111 = vsyncadd [#allocation11], %s110
      %s112 = sshll.u32 [#allocation12], 4
      %s113 = int_to_ptr.vmem [resolvable:$true] %s112
      %118 = dma.hbm_to_vmem [thread:$0]  %s11, 1024, %s113, [#allocation11], 64, 64, 4
    $region49: #{tpu_custom_call.1} parent=1 // pred_fallthru
      _
    // Predicated region
    $region50: #{tpu_custom_call.1} parent=1 // pred_check
      _
    $region51: #{tpu_custom_call.1} parent=1 // pred_check_branch
      %120 = sbr.rel (0) target = $region53
    $region52: #{tpu_custom_call.1} parent=1 // pred_region
      _
    $region53: #{tpu_custom_call.1} parent=1 // pred_fallthru
      _
    // Predicated region
    $region54: #{tpu_custom_call.1} parent=1 // pred_check
      _
    $region55: #{tpu_custom_call.1} parent=1 // pred_check_branch
      %122 = sbr.rel (0) target = $region57
    $region56: #{tpu_custom_call.1} parent=1 // pred_region
      %s124 = ssub.s32 1024, 1024
      %125 = vsyncadd [#allocation14], %s124
      %s126 = sshll.u32 [#allocation13], 4
      %s127 = int_to_ptr.vmem [resolvable:$true] %s126
      %132 = dma.hbm_to_vmem [thread:$0]  %s13, 1024, %s127, [#allocation14], 64, 64, 4
    $region57: #{tpu_custom_call.1} parent=1 // pred_fallthru
      _
    // Predicated region
    $region58: #{tpu_custom_call.1} parent=1 // pred_check
      _
    $region59: #{tpu_custom_call.1} parent=1 // pred_check_branch
      %134 = sbr.rel (0) target = $region61
    $region60: #{tpu_custom_call.1} parent=1 // pred_region
      _
    $region61: #{tpu_custom_call.1} parent=1 // pred_fallthru
      _
    // Predicated region
    $region62: #{tpu_custom_call.1} parent=1 // pred_check
      _
    $region63: #{tpu_custom_call.1} parent=1 // pred_check_branch
      %136 = sbr.rel (0) target = $region65
    $region64: #{tpu_custom_call.1} parent=1 // pred_region
      %137 = dma.done [#allocation3], 256
    $region65: #{tpu_custom_call.1} parent=1 // pred_fallthru
      _
    // Predicated region
    $region66: #{tpu_custom_call.1} parent=1 // pred_check
      _
    $region67: #{tpu_custom_call.1} parent=1 // pred_check_branch
      %139 = sbr.rel (0) target = $region69
    $region68: #{tpu_custom_call.1} parent=1 // pred_region
      %140 = dma.done [#allocation5], 256
    $region69: #{tpu_custom_call.1} parent=1 // pred_fallthru
      _
    // Predicated region
    $region70: #{tpu_custom_call.1} parent=1 // pred_check
      _
    $region71: #{tpu_custom_call.1} parent=1 // pred_check_branch
      %142 = sbr.rel (0) target = $region73
    $region72: #{tpu_custom_call.1} parent=1 // pred_region
      %143 = dma.done [#allocation5], 2048
    $region73: #{tpu_custom_call.1} parent=1 // pred_fallthru
      _
    // Predicated region
    $region74: #{tpu_custom_call.1} parent=1 // pred_check
      _
    $region75: #{tpu_custom_call.1} parent=1 // pred_check_branch
      %145 = sbr.rel (0) target = $region77
    $region76: #{tpu_custom_call.1} parent=1 // pred_region
      %146 = dma.done [#allocation8], 8192
    $region77: #{tpu_custom_call.1} parent=1 // pred_fallthru
      _
    // Predicated region
    $region78: #{tpu_custom_call.1} parent=1 // pred_check
      _
    $region79: #{tpu_custom_call.1} parent=1 // pred_check_branch
      %148 = sbr.rel (0) target = $region81
    $region80: #{tpu_custom_call.1} parent=1 // pred_region
      %149 = dma.done [#allocation8], 8192
    $region81: #{tpu_custom_call.1} parent=1 // pred_fallthru
      _
    // Predicated region
    $region82: #{tpu_custom_call.1} parent=1 // pred_check
      _
    $region83: #{tpu_custom_call.1} parent=1 // pred_check_branch
      %151 = sbr.rel (0) target = $region85
    $region84: #{tpu_custom_call.1} parent=1 // pred_region
      %152 = dma.done [#allocation11], 2048
    $region85: #{tpu_custom_call.1} parent=1 // pred_fallthru
      _
    // Predicated region
    $region86: #{tpu_custom_call.1} parent=1 // pred_check
      _
    $region87: #{tpu_custom_call.1} parent=1 // pred_check_branch
      %154 = sbr.rel (0) target = $region89
    $region88: #{tpu_custom_call.1} parent=1 // pred_region
      %155 = dma.done [#allocation11], 1024
    $region89: #{tpu_custom_call.1} parent=1 // pred_fallthru
      _
    // Predicated region
    $region90: #{tpu_custom_call.1} parent=1 // pred_check
      _
    $region91: #{tpu_custom_call.1} parent=1 // pred_check_branch
      %157 = sbr.rel (0) target = $region93
    $region92: #{tpu_custom_call.1} parent=1 // pred_region
      %158 = dma.done [#allocation14], 1024
    $region93: #{tpu_custom_call.1} parent=1 // pred_fallthru
      _
    %v160 = vld [vmem:[#allocation2] sm:$0xff]
    %v161 = vld [vmem:[#allocation2 + $0x8] sm:$0xff]
    %v162 = vpack.c.bf16 %v161, %v160
    %v163 = vld [vmem:[#allocation4] sm:$0xf]
    %v164 = vld [vmem:[#allocation4 + $0x4] sm:$0xf]
    %v165 = vld [vmem:[#allocation4 + $0x8] sm:$0xf]
    %v166 = vld [vmem:[#allocation4 + $0xc] sm:$0xf]
    %v167 = vld [vmem:[%s2] sm:$0x1]
    %v169 = vlaneseq
    %v170 = vshrl.u32 %v169, 7
    %v171 = vsub.s32 0, %v170
    %v172 = vrot.slane %v167, %v171
    %v178 = vunpack.c.l.b16 %v163
    %v179 = vunpack.c.l.b16 %v164
    %v180 = vunpack.c.l.b16 %v165
    %v181 = vunpack.c.l.b16 %v166
    %v182 = vpack.c.b16 %v179, %v178
    %v183 = vpack.c.b16 %v181, %v180
    %vm186 = vcmask 261120
    %v188 = vsel %vm186, %v162, 0
    %190 = vmatprep.subr.bf16.mxu0 0
    %191 = vmatpush1.bf16.msra.mxu0 %v182
    %192 = vmatprep.subr.bf16.mxu0 0
    %193 = vmatpush1.bf16.msra.mxu0 %v183
    %194 = vmatprep.subr.bf16.mxu0 0
    %195 = vmatpush1.bf16.msra.mxu0 0
    %196 = vmatprep.subr.bf16.mxu0 0
    %197 = vmatpush1.bf16.msra.mxu0 0
    %198 = vmatprep.subr.bf16.mxu0 0
    %199 = vmatpush1.bf16.msra.mxu0 0
    %200 = vmatprep.subr.bf16.mxu0 0
    %201 = vmatpush1.bf16.msra.mxu0 0
    %202 = vmatprep.subr.bf16.mxu0 0
    %203 = vmatpush1.bf16.msra.mxu0 0
    %204 = vmatprep.subr.bf16.mxu0 0
    %205 = vmatpush1.bf16.msra.mxu0 0
    %206 = vmatprep.subr.bf16.mxu0 0
    %207 = vmatpush1.bf16.msra.mxu0 0
    %208 = vmatprep.subr.bf16.mxu0 0
    %209 = vmatpush1.bf16.msra.mxu0 0
    %210 = vmatprep.subr.bf16.mxu0 0
    %211 = vmatpush1.bf16.msra.mxu0 0
    %212 = vmatprep.subr.bf16.mxu0 0
    %213 = vmatpush1.bf16.msra.mxu0 0
    %214 = vmatprep.subr.bf16.mxu0 0
    %215 = vmatpush1.bf16.msra.mxu0 0
    %216 = vmatprep.subr.bf16.mxu0 0
    %217 = vmatpush1.bf16.msra.mxu0 0
    %218 = vmatprep.subr.bf16.mxu0 0
    %219 = vmatpush1.bf16.msra.mxu0 0
    %220 = vmatprep.subr.bf16.mxu0 0
    %221 = vmatpush1.bf16.msra.mxu0 0
    %222 = vmatprep.mubr.bf16.mxu0 0
    %223 = vmatmul.mubr.bf16.gmra.mrb[0].mxu0 %v188
    %v224 = vpop.f32.mrb[0].mxu0
    %v225 = vadd.f32 %v172, %v224
    %v226 = vpop.f32.mrb[0].mxu0
    %v227 = vpop.f32.mrb[0].mxu0
    %v228 = vadd.f32 %v172, %v227
    %v229 = vpop.f32.mrb[0].mxu0
    %230 = vdwg.mxu0
    %v231 = vmax.f32 %v225, 0.0
    %v232 = vmax.f32 %v228, 0.0
    %v233 = vpack.c.bf16 %v232, %v231
    %v234 = vld [vmem:[#allocation6] sm:$0xff]
    %v235 = vld [vmem:[#allocation6 + $0x8] sm:$0xff]
    %v236 = vld [vmem:[#allocation6 + $0x10] sm:$0xff]
    %v237 = vld [vmem:[#allocation6 + $0x18] sm:$0xff]
    %v238 = vld [vmem:[#allocation6 + $0x20] sm:$0xff]
    %v239 = vld [vmem:[#allocation6 + $0x28] sm:$0xff]
    %v240 = vld [vmem:[#allocation6 + $0x30] sm:$0xff]
    %v241 = vld [vmem:[#allocation6 + $0x38] sm:$0xff]
    %v242 = vld [vmem:[#allocation6 + $0x40] sm:$0xff]
    %v243 = vld [vmem:[#allocation6 + $0x48] sm:$0xff]
    %v244 = vld [vmem:[#allocation6 + $0x50] sm:$0xff]
    %v245 = vld [vmem:[#allocation6 + $0x58] sm:$0xff]
    %v246 = vld [vmem:[#allocation6 + $0x60] sm:$0xff]
    %v247 = vld [vmem:[#allocation6 + $0x68] sm:$0xff]
    %v248 = vld [vmem:[#allocation6 + $0x70] sm:$0xff]
    %v249 = vld [vmem:[#allocation6 + $0x78] sm:$0xff]
    %v250 = vld [vmem:[%s4] sm:$0x3]
    %v252 = vlaneseq
    %v253 = vshrl.u32 %v252, 7
    %v254 = vsub.s32 0, %v253
    %v255 = vrot.slane %v250, %v254
    %v256 = vlaneseq
    %v257 = vshrl.u32 %v256, 7
    %v258 = vsub.s32 1, %v257
    %v259 = vrot.slane %v250, %v258
    %v278 = vunpack.c.l.b16 %v234
    %v279 = vunpack.c.h.b16 %v234
    %v280 = vunpack.c.l.b16 %v235
    %v281 = vunpack.c.h.b16 %v235
    %v282 = vunpack.c.l.b16 %v236
    %v283 = vunpack.c.h.b16 %v236
    %v284 = vunpack.c.l.b16 %v237
    %v285 = vunpack.c.h.b16 %v237
    %v286 = vunpack.c.l.b16 %v238
    %v287 = vunpack.c.h.b16 %v238
    %v288 = vunpack.c.l.b16 %v239
    %v289 = vunpack.c.h.b16 %v239
    %v290 = vunpack.c.l.b16 %v240
    %v291 = vunpack.c.h.b16 %v240
    %v292 = vunpack.c.l.b16 %v241
    %v293 = vunpack.c.h.b16 %v241
    %v294 = vunpack.c.l.b16 %v242
    %v295 = vunpack.c.h.b16 %v242
    %v296 = vunpack.c.l.b16 %v243
    %v297 = vunpack.c.h.b16 %v243
    %v298 = vunpack.c.l.b16 %v244
    %v299 = vunpack.c.h.b16 %v244
    %v300 = vunpack.c.l.b16 %v245
    %v301 = vunpack.c.h.b16 %v245
    %v302 = vunpack.c.l.b16 %v246
    %v303 = vunpack.c.h.b16 %v246
    %v304 = vunpack.c.l.b16 %v247
    %v305 = vunpack.c.h.b16 %v247
    %v306 = vunpack.c.l.b16 %v248
    %v307 = vunpack.c.h.b16 %v248
    %v308 = vunpack.c.l.b16 %v249
    %v309 = vunpack.c.h.b16 %v249
    %v310 = vpack.c.b16 %v280, %v278
    %v311 = vpack.c.b16 %v281, %v279
    %v312 = vpack.c.b16 %v284, %v282
    %v313 = vpack.c.b16 %v285, %v283
    %v314 = vpack.c.b16 %v288, %v286
    %v315 = vpack.c.b16 %v289, %v287
    %v316 = vpack.c.b16 %v292, %v290
    %v317 = vpack.c.b16 %v293, %v291
    %v318 = vpack.c.b16 %v296, %v294
    %v319 = vpack.c.b16 %v297, %v295
    %v320 = vpack.c.b16 %v300, %v298
    %v321 = vpack.c.b16 %v301, %v299
    %v322 = vpack.c.b16 %v304, %v302
    %v323 = vpack.c.b16 %v305, %v303
    %v324 = vpack.c.b16 %v308, %v306
    %v325 = vpack.c.b16 %v309, %v307
    %342 = vmatprep.subr.bf16.mxu0 %v311
    %343 = vmatpush1.bf16.msra.mxu0 %v310
    %344 = vmatprep.subr.bf16.mxu0 %v313
    %345 = vmatpush1.bf16.msra.mxu0 %v312
    %346 = vmatprep.subr.bf16.mxu0 %v315
    %347 = vmatpush1.bf16.msra.mxu0 %v314
    %348 = vmatprep.subr.bf16.mxu0 %v317
    %349 = vmatpush1.bf16.msra.mxu0 %v316
    %350 = vmatprep.subr.bf16.mxu0 %v319
    %351 = vmatpush1.bf16.msra.mxu0 %v318
    %352 = vmatprep.subr.bf16.mxu0 %v321
    %353 = vmatpush1.bf16.msra.mxu0 %v320
    %354 = vmatprep.subr.bf16.mxu0 %v323
    %355 = vmatpush1.bf16.msra.mxu0 %v322
    %356 = vmatprep.subr.bf16.mxu0 %v325
    %357 = vmatpush1.bf16.msra.mxu0 %v324
    %358 = vmatprep.subr.bf16.mxu0 0
    %359 = vmatpush1.bf16.msra.mxu0 0
    %360 = vmatprep.subr.bf16.mxu0 0
    %361 = vmatpush1.bf16.msra.mxu0 0
    %362 = vmatprep.subr.bf16.mxu0 0
    %363 = vmatpush1.bf16.msra.mxu0 0
    %364 = vmatprep.subr.bf16.mxu0 0
    %365 = vmatpush1.bf16.msra.mxu0 0
    %366 = vmatprep.subr.bf16.mxu0 0
    %367 = vmatpush1.bf16.msra.mxu0 0
    %368 = vmatprep.subr.bf16.mxu0 0
    %369 = vmatpush1.bf16.msra.mxu0 0
    %370 = vmatprep.subr.bf16.mxu0 0
    %371 = vmatpush1.bf16.msra.mxu0 0
    %372 = vmatprep.subr.bf16.mxu0 0
    %373 = vmatpush1.bf16.msra.mxu0 0
    %374 = vmatprep.mubr.bf16.mxu0 0
    %375 = vmatmul.mubr.bf16.gmra.mrb[0].mxu0 %v233
    %v376 = vpop.f32.mrb[0].mxu0
    %v377 = vadd.f32 %v255, %v376
    %v378 = vpop.f32.mrb[0].mxu0
    %v379 = vadd.f32 %v259, %v378
    %v380 = vpop.f32.mrb[0].mxu0
    %v381 = vadd.f32 %v255, %v380
    %v382 = vpop.f32.mrb[0].mxu0
    %v383 = vadd.f32 %v259, %v382
    %384 = vdwg.mxu0
    %v385 = vmax.f32 %v377, 0.0
    %v386 = vmax.f32 %v379, 0.0
    %v387 = vmax.f32 %v381, 0.0
    %v388 = vmax.f32 %v383, 0.0
    %v389 = vpack.c.bf16 %v387, %v385
    %v390 = vpack.c.bf16 %v388, %v386
    %v391 = vld [vmem:[#allocation7] sm:$0xff]
    %v392 = vld [vmem:[#allocation7 + $0x8] sm:$0xff]
    %v393 = vld [vmem:[#allocation7 + $0x10] sm:$0xff]
    %v394 = vld [vmem:[#allocation7 + $0x18] sm:$0xff]
    %v395 = vld [vmem:[#allocation7 + $0x20] sm:$0xff]
    %v396 = vld [vmem:[#allocation7 + $0x28] sm:$0xff]
    %v397 = vld [vmem:[#allocation7 + $0x30] sm:$0xff]
    %v398 = vld [vmem:[#allocation7 + $0x38] sm:$0xff]
    %v399 = vld [vmem:[#allocation7 + $0x40] sm:$0xff]
    %v400 = vld [vmem:[#allocation7 + $0x48] sm:$0xff]
    %v401 = vld [vmem:[#allocation7 + $0x50] sm:$0xff]
    %v402 = vld [vmem:[#allocation7 + $0x58] sm:$0xff]
    %v403 = vld [vmem:[#allocation7 + $0x60] sm:$0xff]
    %v404 = vld [vmem:[#allocation7 + $0x68] sm:$0xff]
    %v405 = vld [vmem:[#allocation7 + $0x70] sm:$0xff]
    %v406 = vld [vmem:[#allocation7 + $0x78] sm:$0xff]
    %v407 = vld [vmem:[#allocation7 + $0x80] sm:$0xff]
    %v408 = vld [vmem:[#allocation7 + $0x88] sm:$0xff]
    %v409 = vld [vmem:[#allocation7 + $0x90] sm:$0xff]
    %v410 = vld [vmem:[#allocation7 + $0x98] sm:$0xff]
    %v411 = vld [vmem:[#allocation7 + $0xa0] sm:$0xff]
    %v412 = vld [vmem:[#allocation7 + $0xa8] sm:$0xff]
    %v413 = vld [vmem:[#allocation7 + $0xb0] sm:$0xff]
    %v414 = vld [vmem:[#allocation7 + $0xb8] sm:$0xff]
    %v415 = vld [vmem:[#allocation7 + $0xc0] sm:$0xff]
    %v416 = vld [vmem:[#allocation7 + $0xc8] sm:$0xff]
    %v417 = vld [vmem:[#allocation7 + $0xd0] sm:$0xff]
    %v418 = vld [vmem:[#allocation7 + $0xd8] sm:$0xff]
    %v419 = vld [vmem:[#allocation7 + $0xe0] sm:$0xff]
    %v420 = vld [vmem:[#allocation7 + $0xe8] sm:$0xff]
    %v421 = vld [vmem:[#allocation7 + $0xf0] sm:$0xff]
    %v422 = vld [vmem:[#allocation7 + $0xf8] sm:$0xff]
    %v423 = vld [vmem:[#allocation7 + $0x100] sm:$0xff]
    %v424 = vld [vmem:[#allocation7 + $0x108] sm:$0xff]
    %v425 = vld [vmem:[#allocation7 + $0x110] sm:$0xff]
    %v426 = vld [vmem:[#allocation7 + $0x118] sm:$0xff]
    %v427 = vld [vmem:[#allocation7 + $0x120] sm:$0xff]
    %v428 = vld [vmem:[#allocation7 + $0x128] sm:$0xff]
    %v429 = vld [vmem:[#allocation7 + $0x130] sm:$0xff]
    %v430 = vld [vmem:[#allocation7 + $0x138] sm:$0xff]
    %v431 = vld [vmem:[#allocation7 + $0x140] sm:$0xff]
    %v432 = vld [vmem:[#allocation7 + $0x148] sm:$0xff]
    %v433 = vld [vmem:[#allocation7 + $0x150] sm:$0xff]
    %v434 = vld [vmem:[#allocation7 + $0x158] sm:$0xff]
    %v435 = vld [vmem:[#allocation7 + $0x160] sm:$0xff]
    %v436 = vld [vmem:[#allocation7 + $0x168] sm:$0xff]
    %v437 = vld [vmem:[#allocation7 + $0x170] sm:$0xff]
    %v438 = vld [vmem:[#allocation7 + $0x178] sm:$0xff]
    %v439 = vld [vmem:[#allocation7 + $0x180] sm:$0xff]
    %v440 = vld [vmem:[#allocation7 + $0x188] sm:$0xff]
    %v441 = vld [vmem:[#allocation7 + $0x190] sm:$0xff]
    %v442 = vld [vmem:[#allocation7 + $0x198] sm:$0xff]
    %v443 = vld [vmem:[#allocation7 + $0x1a0] sm:$0xff]
    %v444 = vld [vmem:[#allocation7 + $0x1a8] sm:$0xff]
    %v445 = vld [vmem:[#allocation7 + $0x1b0] sm:$0xff]
    %v446 = vld [vmem:[#allocation7 + $0x1b8] sm:$0xff]
    %v447 = vld [vmem:[#allocation7 + $0x1c0] sm:$0xff]
    %v448 = vld [vmem:[#allocation7 + $0x1c8] sm:$0xff]
    %v449 = vld [vmem:[#allocation7 + $0x1d0] sm:$0xff]
    %v450 = vld [vmem:[#allocation7 + $0x1d8] sm:$0xff]
    %v451 = vld [vmem:[#allocation7 + $0x1e0] sm:$0xff]
    %v452 = vld [vmem:[#allocation7 + $0x1e8] sm:$0xff]
    %v453 = vld [vmem:[#allocation7 + $0x1f0] sm:$0xff]
    %v454 = vld [vmem:[#allocation7 + $0x1f8] sm:$0xff]
    %v455 = vld [vmem:[%s6] sm:$0xf]
    %v457 = vlaneseq
    %v458 = vshrl.u32 %v457, 7
    %v459 = vsub.s32 0, %v458
    %v460 = vrot.slane %v455, %v459
    %v461 = vlaneseq
    %v462 = vshrl.u32 %v461, 7
    %v463 = vsub.s32 1, %v462
    %v464 = vrot.slane %v455, %v463
    %v465 = vlaneseq
    %v466 = vshrl.u32 %v465, 7
    %v467 = vsub.s32 2, %v466
    %v468 = vrot.slane %v455, %v467
    %v469 = vlaneseq
    %v470 = vshrl.u32 %v469, 7
    %v471 = vsub.s32 3, %v470
    %v472 = vrot.slane %v455, %v471
    %v541 = vunpack.c.l.b16 %v391
    %v542 = vunpack.c.h.b16 %v391
    %v543 = vunpack.c.l.b16 %v392
    %v544 = vunpack.c.h.b16 %v392
    %v545 = vunpack.c.l.b16 %v393
    %v546 = vunpack.c.h.b16 %v393
    %v547 = vunpack.c.l.b16 %v394
    %v548 = vunpack.c.h.b16 %v394
    %v549 = vunpack.c.l.b16 %v395
    %v550 = vunpack.c.h.b16 %v395
    %v551 = vunpack.c.l.b16 %v396
    %v552 = vunpack.c.h.b16 %v396
    %v553 = vunpack.c.l.b16 %v397
    %v554 = vunpack.c.h.b16 %v397
    %v555 = vunpack.c.l.b16 %v398
    %v556 = vunpack.c.h.b16 %v398
    %v557 = vunpack.c.l.b16 %v399
    %v558 = vunpack.c.h.b16 %v399
    %v559 = vunpack.c.l.b16 %v400
    %v560 = vunpack.c.h.b16 %v400
    %v561 = vunpack.c.l.b16 %v401
    %v562 = vunpack.c.h.b16 %v401
    %v563 = vunpack.c.l.b16 %v402
    %v564 = vunpack.c.h.b16 %v402
    %v565 = vunpack.c.l.b16 %v403
    %v566 = vunpack.c.h.b16 %v403
    %v567 = vunpack.c.l.b16 %v404
    %v568 = vunpack.c.h.b16 %v404
    %v569 = vunpack.c.l.b16 %v405
    %v570 = vunpack.c.h.b16 %v405
    %v571 = vunpack.c.l.b16 %v406
    %v572 = vunpack.c.h.b16 %v406
    %v573 = vunpack.c.l.b16 %v407
    %v574 = vunpack.c.h.b16 %v407
    %v575 = vunpack.c.l.b16 %v408
    %v576 = vunpack.c.h.b16 %v408
    %v577 = vunpack.c.l.b16 %v409
    %v578 = vunpack.c.h.b16 %v409
    %v579 = vunpack.c.l.b16 %v410
    %v580 = vunpack.c.h.b16 %v410
    %v581 = vunpack.c.l.b16 %v411
    %v582 = vunpack.c.h.b16 %v411
    %v583 = vunpack.c.l.b16 %v412
    %v584 = vunpack.c.h.b16 %v412
    %v585 = vunpack.c.l.b16 %v413
    %v586 = vunpack.c.h.b16 %v413
    %v587 = vunpack.c.l.b16 %v414
    %v588 = vunpack.c.h.b16 %v414
    %v589 = vunpack.c.l.b16 %v415
    %v590 = vunpack.c.h.b16 %v415
    %v591 = vunpack.c.l.b16 %v416
    %v592 = vunpack.c.h.b16 %v416
    %v593 = vunpack.c.l.b16 %v417
    %v594 = vunpack.c.h.b16 %v417
    %v595 = vunpack.c.l.b16 %v418
    %v596 = vunpack.c.h.b16 %v418
    %v597 = vunpack.c.l.b16 %v419
    %v598 = vunpack.c.h.b16 %v419
    %v599 = vunpack.c.l.b16 %v420
    %v600 = vunpack.c.h.b16 %v420
    %v601 = vunpack.c.l.b16 %v421
    %v602 = vunpack.c.h.b16 %v421
    %v603 = vunpack.c.l.b16 %v422
    %v604 = vunpack.c.h.b16 %v422
    %v605 = vunpack.c.l.b16 %v423
    %v606 = vunpack.c.h.b16 %v423
    %v607 = vunpack.c.l.b16 %v424
    %v608 = vunpack.c.h.b16 %v424
    %v609 = vunpack.c.l.b16 %v425
    %v610 = vunpack.c.h.b16 %v425
    %v611 = vunpack.c.l.b16 %v426
    %v612 = vunpack.c.h.b16 %v426
    %v613 = vunpack.c.l.b16 %v427
    %v614 = vunpack.c.h.b16 %v427
    %v615 = vunpack.c.l.b16 %v428
    %v616 = vunpack.c.h.b16 %v428
    %v617 = vunpack.c.l.b16 %v429
    %v618 = vunpack.c.h.b16 %v429
    %v619 = vunpack.c.l.b16 %v430
    %v620 = vunpack.c.h.b16 %v430
    %v621 = vunpack.c.l.b16 %v431
    %v622 = vunpack.c.h.b16 %v431
    %v623 = vunpack.c.l.b16 %v432
    %v624 = vunpack.c.h.b16 %v432
    %v625 = vunpack.c.l.b16 %v433
    %v626 = vunpack.c.h.b16 %v433
    %v627 = vunpack.c.l.b16 %v434
    %v628 = vunpack.c.h.b16 %v434
    %v629 = vunpack.c.l.b16 %v435
    %v630 = vunpack.c.h.b16 %v435
    %v631 = vunpack.c.l.b16 %v436
    %v632 = vunpack.c.h.b16 %v436
    %v633 = vunpack.c.l.b16 %v437
    %v634 = vunpack.c.h.b16 %v437
    %v635 = vunpack.c.l.b16 %v438
    %v636 = vunpack.c.h.b16 %v438
    %v637 = vunpack.c.l.b16 %v439
    %v638 = vunpack.c.h.b16 %v439
    %v639 = vunpack.c.l.b16 %v440
    %v640 = vunpack.c.h.b16 %v440
    %v641 = vunpack.c.l.b16 %v441
    %v642 = vunpack.c.h.b16 %v441
    %v643 = vunpack.c.l.b16 %v442
    %v644 = vunpack.c.h.b16 %v442
    %v645 = vunpack.c.l.b16 %v443
    %v646 = vunpack.c.h.b16 %v443
    %v647 = vunpack.c.l.b16 %v444
    %v648 = vunpack.c.h.b16 %v444
    %v649 = vunpack.c.l.b16 %v445
    %v650 = vunpack.c.h.b16 %v445
    %v651 = vunpack.c.l.b16 %v446
    %v652 = vunpack.c.h.b16 %v446
    %v653 = vunpack.c.l.b16 %v447
    %v654 = vunpack.c.h.b16 %v447
    %v655 = vunpack.c.l.b16 %v448
    %v656 = vunpack.c.h.b16 %v448
    %v657 = vunpack.c.l.b16 %v449
    %v658 = vunpack.c.h.b16 %v449
    %v659 = vunpack.c.l.b16 %v450
    %v660 = vunpack.c.h.b16 %v450
    %v661 = vunpack.c.l.b16 %v451
    %v662 = vunpack.c.h.b16 %v451
    %v663 = vunpack.c.l.b16 %v452
    %v664 = vunpack.c.h.b16 %v452
    %v665 = vunpack.c.l.b16 %v453
    %v666 = vunpack.c.h.b16 %v453
    %v667 = vunpack.c.l.b16 %v454
    %v668 = vunpack.c.h.b16 %v454
    %v669 = vpack.c.b16 %v545, %v541
    %v670 = vpack.c.b16 %v546, %v542
    %v671 = vpack.c.b16 %v547, %v543
    %v672 = vpack.c.b16 %v548, %v544
    %v673 = vpack.c.b16 %v553, %v549
    %v674 = vpack.c.b16 %v554, %v550
    %v675 = vpack.c.b16 %v555, %v551
    %v676 = vpack.c.b16 %v556, %v552
    %v677 = vpack.c.b16 %v561, %v557
    %v678 = vpack.c.b16 %v562, %v558
    %v679 = vpack.c.b16 %v563, %v559
    %v680 = vpack.c.b16 %v564, %v560
    %v681 = vpack.c.b16 %v569, %v565
    %v682 = vpack.c.b16 %v570, %v566
    %v683 = vpack.c.b16 %v571, %v567
    %v684 = vpack.c.b16 %v572, %v568
    %v685 = vpack.c.b16 %v577, %v573
    %v686 = vpack.c.b16 %v578, %v574
    %v687 = vpack.c.b16 %v579, %v575
    %v688 = vpack.c.b16 %v580, %v576
    %v689 = vpack.c.b16 %v585, %v581
    %v690 = vpack.c.b16 %v586, %v582
    %v691 = vpack.c.b16 %v587, %v583
    %v692 = vpack.c.b16 %v588, %v584
    %v693 = vpack.c.b16 %v593, %v589
    %v694 = vpack.c.b16 %v594, %v590
    %v695 = vpack.c.b16 %v595, %v591
    %v696 = vpack.c.b16 %v596, %v592
    %v697 = vpack.c.b16 %v601, %v597
    %v698 = vpack.c.b16 %v602, %v598
    %v699 = vpack.c.b16 %v603, %v599
    %v700 = vpack.c.b16 %v604, %v600
    %v701 = vpack.c.b16 %v609, %v605
    %v702 = vpack.c.b16 %v610, %v606
    %v703 = vpack.c.b16 %v611, %v607
    %v704 = vpack.c.b16 %v612, %v608
    %v705 = vpack.c.b16 %v617, %v613
    %v706 = vpack.c.b16 %v618, %v614
    %v707 = vpack.c.b16 %v619, %v615
    %v708 = vpack.c.b16 %v620, %v616
    %v709 = vpack.c.b16 %v625, %v621
    %v710 = vpack.c.b16 %v626, %v622
    %v711 = vpack.c.b16 %v627, %v623
    %v712 = vpack.c.b16 %v628, %v624
    %v713 = vpack.c.b16 %v633, %v629
    %v714 = vpack.c.b16 %v634, %v630
    %v715 = vpack.c.b16 %v635, %v631
    %v716 = vpack.c.b16 %v636, %v632
    %v717 = vpack.c.b16 %v641, %v637
    %v718 = vpack.c.b16 %v642, %v638
    %v719 = vpack.c.b16 %v643, %v639
    %v720 = vpack.c.b16 %v644, %v640
    %v721 = vpack.c.b16 %v649, %v645
    %v722 = vpack.c.b16 %v650, %v646
    %v723 = vpack.c.b16 %v651, %v647
    %v724 = vpack.c.b16 %v652, %v648
    %v725 = vpack.c.b16 %v657, %v653
    %v726 = vpack.c.b16 %v658, %v654
    %v727 = vpack.c.b16 %v659, %v655
    %v728 = vpack.c.b16 %v660, %v656
    %v729 = vpack.c.b16 %v665, %v661
    %v730 = vpack.c.b16 %v666, %v662
    %v731 = vpack.c.b16 %v667, %v663
    %v732 = vpack.c.b16 %v668, %v664
    %797 = vmatprep.subr.bf16.mxu0 %v670
    %798 = vmatpush1.bf16.msra.mxu0 %v669
    %799 = vmatprep.subr.bf16.mxu0 %v674
    %800 = vmatpush1.bf16.msra.mxu0 %v673
    %801 = vmatprep.subr.bf16.mxu0 %v678
    %802 = vmatpush1.bf16.msra.mxu0 %v677
    %803 = vmatprep.subr.bf16.mxu0 %v682
    %804 = vmatpush1.bf16.msra.mxu0 %v681
    %805 = vmatprep.subr.bf16.mxu0 %v686
    %806 = vmatpush1.bf16.msra.mxu0 %v685
    %807 = vmatprep.subr.bf16.mxu0 %v690
    %808 = vmatpush1.bf16.msra.mxu0 %v689
    %809 = vmatprep.subr.bf16.mxu0 %v694
    %810 = vmatpush1.bf16.msra.mxu0 %v693
    %811 = vmatprep.subr.bf16.mxu0 %v698
    %812 = vmatpush1.bf16.msra.mxu0 %v697
    %813 = vmatprep.subr.bf16.mxu0 %v702
    %814 = vmatpush1.bf16.msra.mxu0 %v701
    %815 = vmatprep.subr.bf16.mxu0 %v706
    %816 = vmatpush1.bf16.msra.mxu0 %v705
    %817 = vmatprep.subr.bf16.mxu0 %v710
    %818 = vmatpush1.bf16.msra.mxu0 %v709
    %819 = vmatprep.subr.bf16.mxu0 %v714
    %820 = vmatpush1.bf16.msra.mxu0 %v713
    %821 = vmatprep.subr.bf16.mxu0 %v718
    %822 = vmatpush1.bf16.msra.mxu0 %v717
    %823 = vmatprep.subr.bf16.mxu0 %v722
    %824 = vmatpush1.bf16.msra.mxu0 %v721
    %825 = vmatprep.subr.bf16.mxu0 %v726
    %826 = vmatpush1.bf16.msra.mxu0 %v725
    %827 = vmatprep.subr.bf16.mxu0 %v730
    %828 = vmatpush1.bf16.msra.mxu0 %v729
    %829 = vmatprep.mubr.bf16.mxu0 %v390
    %830 = vmatmul.mubr.bf16.gmra.mrb[0].mxu0 %v389
    %v831 = vpop.f32.mrb[0].mxu0
    %v832 = vadd.f32 %v460, %v831
    %v833 = vpop.f32.mrb[0].mxu0
    %v834 = vadd.f32 %v464, %v833
    %v835 = vpop.f32.mrb[0].mxu0
    %v836 = vadd.f32 %v460, %v835
    %v837 = vpop.f32.mrb[0].mxu0
    %v838 = vadd.f32 %v464, %v837
    %839 = vdwg.mxu0
    %840 = vmatprep.subr.bf16.mxu0 %v672
    %841 = vmatpush1.bf16.msra.mxu0 %v671
    %842 = vmatprep.subr.bf16.mxu0 %v676
    %843 = vmatpush1.bf16.msra.mxu0 %v675
    %844 = vmatprep.subr.bf16.mxu0 %v680
    %845 = vmatpush1.bf16.msra.mxu0 %v679
    %846 = vmatprep.subr.bf16.mxu0 %v684
    %847 = vmatpush1.bf16.msra.mxu0 %v683
    %848 = vmatprep.subr.bf16.mxu0 %v688
    %849 = vmatpush1.bf16.msra.mxu0 %v687
    %850 = vmatprep.subr.bf16.mxu0 %v692
    %851 = vmatpush1.bf16.msra.mxu0 %v691
    %852 = vmatprep.subr.bf16.mxu0 %v696
    %853 = vmatpush1.bf16.msra.mxu0 %v695
    %854 = vmatprep.subr.bf16.mxu0 %v700
    %855 = vmatpush1.bf16.msra.mxu0 %v699
    %856 = vmatprep.subr.bf16.mxu0 %v704
    %857 = vmatpush1.bf16.msra.mxu0 %v703
    %858 = vmatprep.subr.bf16.mxu0 %v708
    %859 = vmatpush1.bf16.msra.mxu0 %v707
    %860 = vmatprep.subr.bf16.mxu0 %v712
    %861 = vmatpush1.bf16.msra.mxu0 %v711
    %862 = vmatprep.subr.bf16.mxu0 %v716
    %863 = vmatpush1.bf16.msra.mxu0 %v715
    %864 = vmatprep.subr.bf16.mxu0 %v720
    %865 = vmatpush1.bf16.msra.mxu0 %v719
    %866 = vmatprep.subr.bf16.mxu0 %v724
    %867 = vmatpush1.bf16.msra.mxu0 %v723
    %868 = vmatprep.subr.bf16.mxu0 %v728
    %869 = vmatpush1.bf16.msra.mxu0 %v727
    %870 = vmatprep.subr.bf16.mxu0 %v732
    %871 = vmatpush1.bf16.msra.mxu0 %v731
    %872 = vmatprep.mubr.bf16.mxu0 %v390
    %873 = vmatmul.mubr.bf16.gmra.mrb[0].mxu0 %v389
    %v874 = vpop.f32.mrb[0].mxu0
    %v875 = vadd.f32 %v468, %v874
    %v876 = vpop.f32.mrb[0].mxu0
    %v877 = vadd.f32 %v472, %v876
    %v878 = vpop.f32.mrb[0].mxu0
    %v879 = vadd.f32 %v468, %v878
    %v880 = vpop.f32.mrb[0].mxu0
    %v881 = vadd.f32 %v472, %v880
    %882 = vdwg.mxu0
    %v883 = vmax.f32 %v832, 0.0
    %v884 = vmax.f32 %v834, 0.0
    %v885 = vmax.f32 %v875, 0.0
    %v886 = vmax.f32 %v877, 0.0
    %v887 = vmax.f32 %v836, 0.0
    %v888 = vmax.f32 %v838, 0.0
    %v889 = vmax.f32 %v879, 0.0
    %v890 = vmax.f32 %v881, 0.0
    %v891 = vpack.c.bf16 %v887, %v883
    %v892 = vpack.c.bf16 %v888, %v884
    %v893 = vpack.c.bf16 %v889, %v885
    %v894 = vpack.c.bf16 %v890, %v886
    %v895 = vld [vmem:[#allocation9] sm:$0xff]
    %v896 = vld [vmem:[#allocation9 + $0x8] sm:$0xff]
    %v897 = vld [vmem:[#allocation9 + $0x10] sm:$0xff]
    %v898 = vld [vmem:[#allocation9 + $0x18] sm:$0xff]
    %v899 = vld [vmem:[#allocation9 + $0x20] sm:$0xff]
    %v900 = vld [vmem:[#allocation9 + $0x28] sm:$0xff]
    %v901 = vld [vmem:[#allocation9 + $0x30] sm:$0xff]
    %v902 = vld [vmem:[#allocation9 + $0x38] sm:$0xff]
    %v903 = vld [vmem:[#allocation9 + $0x40] sm:$0xff]
    %v904 = vld [vmem:[#allocation9 + $0x48] sm:$0xff]
    %v905 = vld [vmem:[#allocation9 + $0x50] sm:$0xff]
    %v906 = vld [vmem:[#allocation9 + $0x58] sm:$0xff]
    %v907 = vld [vmem:[#allocation9 + $0x60] sm:$0xff]
    %v908 = vld [vmem:[#allocation9 + $0x68] sm:$0xff]
    %v909 = vld [vmem:[#allocation9 + $0x70] sm:$0xff]
    %v910 = vld [vmem:[#allocation9 + $0x78] sm:$0xff]
    %v911 = vld [vmem:[#allocation9 + $0x80] sm:$0xff]
    %v912 = vld [vmem:[#allocation9 + $0x88] sm:$0xff]
    %v913 = vld [vmem:[#allocation9 + $0x90] sm:$0xff]
    %v914 = vld [vmem:[#allocation9 + $0x98] sm:$0xff]
    %v915 = vld [vmem:[#allocation9 + $0xa0] sm:$0xff]
    %v916 = vld [vmem:[#allocation9 + $0xa8] sm:$0xff]
    %v917 = vld [vmem:[#allocation9 + $0xb0] sm:$0xff]
    %v918 = vld [vmem:[#allocation9 + $0xb8] sm:$0xff]
    %v919 = vld [vmem:[#allocation9 + $0xc0] sm:$0xff]
    %v920 = vld [vmem:[#allocation9 + $0xc8] sm:$0xff]
    %v921 = vld [vmem:[#allocation9 + $0xd0] sm:$0xff]
    %v922 = vld [vmem:[#allocation9 + $0xd8] sm:$0xff]
    %v923 = vld [vmem:[#allocation9 + $0xe0] sm:$0xff]
    %v924 = vld [vmem:[#allocation9 + $0xe8] sm:$0xff]
    %v925 = vld [vmem:[#allocation9 + $0xf0] sm:$0xff]
    %v926 = vld [vmem:[#allocation9 + $0xf8] sm:$0xff]
    %v927 = vld [vmem:[#allocation9 + $0x100] sm:$0xff]
    %v928 = vld [vmem:[#allocation9 + $0x108] sm:$0xff]
    %v929 = vld [vmem:[#allocation9 + $0x110] sm:$0xff]
    %v930 = vld [vmem:[#allocation9 + $0x118] sm:$0xff]
    %v931 = vld [vmem:[#allocation9 + $0x120] sm:$0xff]
    %v932 = vld [vmem:[#allocation9 + $0x128] sm:$0xff]
    %v933 = vld [vmem:[#allocation9 + $0x130] sm:$0xff]
    %v934 = vld [vmem:[#allocation9 + $0x138] sm:$0xff]
    %v935 = vld [vmem:[#allocation9 + $0x140] sm:$0xff]
    %v936 = vld [vmem:[#allocation9 + $0x148] sm:$0xff]
    %v937 = vld [vmem:[#allocation9 + $0x150] sm:$0xff]
    %v938 = vld [vmem:[#allocation9 + $0x158] sm:$0xff]
    %v939 = vld [vmem:[#allocation9 + $0x160] sm:$0xff]
    %v940 = vld [vmem:[#allocation9 + $0x168] sm:$0xff]
    %v941 = vld [vmem:[#allocation9 + $0x170] sm:$0xff]
    %v942 = vld [vmem:[#allocation9 + $0x178] sm:$0xff]
    %v943 = vld [vmem:[#allocation9 + $0x180] sm:$0xff]
    %v944 = vld [vmem:[#allocation9 + $0x188] sm:$0xff]
    %v945 = vld [vmem:[#allocation9 + $0x190] sm:$0xff]
    %v946 = vld [vmem:[#allocation9 + $0x198] sm:$0xff]
    %v947 = vld [vmem:[#allocation9 + $0x1a0] sm:$0xff]
    %v948 = vld [vmem:[#allocation9 + $0x1a8] sm:$0xff]
    %v949 = vld [vmem:[#allocation9 + $0x1b0] sm:$0xff]
    %v950 = vld [vmem:[#allocation9 + $0x1b8] sm:$0xff]
    %v951 = vld [vmem:[#allocation9 + $0x1c0] sm:$0xff]
    %v952 = vld [vmem:[#allocation9 + $0x1c8] sm:$0xff]
    %v953 = vld [vmem:[#allocation9 + $0x1d0] sm:$0xff]
    %v954 = vld [vmem:[#allocation9 + $0x1d8] sm:$0xff]
    %v955 = vld [vmem:[#allocation9 + $0x1e0] sm:$0xff]
    %v956 = vld [vmem:[#allocation9 + $0x1e8] sm:$0xff]
    %v957 = vld [vmem:[#allocation9 + $0x1f0] sm:$0xff]
    %v958 = vld [vmem:[#allocation9 + $0x1f8] sm:$0xff]
    %v959 = vld [vmem:[%s8] sm:$0x3]
    %v961 = vlaneseq
    %v962 = vshrl.u32 %v961, 7
    %v963 = vsub.s32 0, %v962
    %v964 = vrot.slane %v959, %v963
    %v965 = vlaneseq
    %v966 = vshrl.u32 %v965, 7
    %v967 = vsub.s32 1, %v966
    %v968 = vrot.slane %v959, %v967
    %v1035 = vunpack.c.l.b16 %v895
    %v1036 = vunpack.c.h.b16 %v895
    %v1037 = vunpack.c.l.b16 %v896
    %v1038 = vunpack.c.h.b16 %v896
    %v1039 = vunpack.c.l.b16 %v897
    %v1040 = vunpack.c.h.b16 %v897
    %v1041 = vunpack.c.l.b16 %v898
    %v1042 = vunpack.c.h.b16 %v898
    %v1043 = vunpack.c.l.b16 %v899
    %v1044 = vunpack.c.h.b16 %v899
    %v1045 = vunpack.c.l.b16 %v900
    %v1046 = vunpack.c.h.b16 %v900
    %v1047 = vunpack.c.l.b16 %v901
    %v1048 = vunpack.c.h.b16 %v901
    %v1049 = vunpack.c.l.b16 %v902
    %v1050 = vunpack.c.h.b16 %v902
    %v1051 = vunpack.c.l.b16 %v903
    %v1052 = vunpack.c.h.b16 %v903
    %v1053 = vunpack.c.l.b16 %v904
    %v1054 = vunpack.c.h.b16 %v904
    %v1055 = vunpack.c.l.b16 %v905
    %v1056 = vunpack.c.h.b16 %v905
    %v1057 = vunpack.c.l.b16 %v906
    %v1058 = vunpack.c.h.b16 %v906
    %v1059 = vunpack.c.l.b16 %v907
    %v1060 = vunpack.c.h.b16 %v907
    %v1061 = vunpack.c.l.b16 %v908
    %v1062 = vunpack.c.h.b16 %v908
    %v1063 = vunpack.c.l.b16 %v909
    %v1064 = vunpack.c.h.b16 %v909
    %v1065 = vunpack.c.l.b16 %v910
    %v1066 = vunpack.c.h.b16 %v910
    %v1067 = vunpack.c.l.b16 %v911
    %v1068 = vunpack.c.h.b16 %v911
    %v1069 = vunpack.c.l.b16 %v912
    %v1070 = vunpack.c.h.b16 %v912
    %v1071 = vunpack.c.l.b16 %v913
    %v1072 = vunpack.c.h.b16 %v913
    %v1073 = vunpack.c.l.b16 %v914
    %v1074 = vunpack.c.h.b16 %v914
    %v1075 = vunpack.c.l.b16 %v915
    %v1076 = vunpack.c.h.b16 %v915
    %v1077 = vunpack.c.l.b16 %v916
    %v1078 = vunpack.c.h.b16 %v916
    %v1079 = vunpack.c.l.b16 %v917
    %v1080 = vunpack.c.h.b16 %v917
    %v1081 = vunpack.c.l.b16 %v918
    %v1082 = vunpack.c.h.b16 %v918
    %v1083 = vunpack.c.l.b16 %v919
    %v1084 = vunpack.c.h.b16 %v919
    %v1085 = vunpack.c.l.b16 %v920
    %v1086 = vunpack.c.h.b16 %v920
    %v1087 = vunpack.c.l.b16 %v921
    %v1088 = vunpack.c.h.b16 %v921
    %v1089 = vunpack.c.l.b16 %v922
    %v1090 = vunpack.c.h.b16 %v922
    %v1091 = vunpack.c.l.b16 %v923
    %v1092 = vunpack.c.h.b16 %v923
    %v1093 = vunpack.c.l.b16 %v924
    %v1094 = vunpack.c.h.b16 %v924
    %v1095 = vunpack.c.l.b16 %v925
    %v1096 = vunpack.c.h.b16 %v925
    %v1097 = vunpack.c.l.b16 %v926
    %v1098 = vunpack.c.h.b16 %v926
    %v1099 = vunpack.c.l.b16 %v927
    %v1100 = vunpack.c.h.b16 %v927
    %v1101 = vunpack.c.l.b16 %v928
    %v1102 = vunpack.c.h.b16 %v928
    %v1103 = vunpack.c.l.b16 %v929
    %v1104 = vunpack.c.h.b16 %v929
    %v1105 = vunpack.c.l.b16 %v930
    %v1106 = vunpack.c.h.b16 %v930
    %v1107 = vunpack.c.l.b16 %v931
    %v1108 = vunpack.c.h.b16 %v931
    %v1109 = vunpack.c.l.b16 %v932
    %v1110 = vunpack.c.h.b16 %v932
    %v1111 = vunpack.c.l.b16 %v933
    %v1112 = vunpack.c.h.b16 %v933
    %v1113 = vunpack.c.l.b16 %v934
    %v1114 = vunpack.c.h.b16 %v934
    %v1115 = vunpack.c.l.b16 %v935
    %v1116 = vunpack.c.h.b16 %v935
    %v1117 = vunpack.c.l.b16 %v936
    %v1118 = vunpack.c.h.b16 %v936
    %v1119 = vunpack.c.l.b16 %v937
    %v1120 = vunpack.c.h.b16 %v937
    %v1121 = vunpack.c.l.b16 %v938
    %v1122 = vunpack.c.h.b16 %v938
    %v1123 = vunpack.c.l.b16 %v939
    %v1124 = vunpack.c.h.b16 %v939
    %v1125 = vunpack.c.l.b16 %v940
    %v1126 = vunpack.c.h.b16 %v940
    %v1127 = vunpack.c.l.b16 %v941
    %v1128 = vunpack.c.h.b16 %v941
    %v1129 = vunpack.c.l.b16 %v942
    %v1130 = vunpack.c.h.b16 %v942
    %v1131 = vunpack.c.l.b16 %v943
    %v1132 = vunpack.c.h.b16 %v943
    %v1133 = vunpack.c.l.b16 %v944
    %v1134 = vunpack.c.h.b16 %v944
    %v1135 = vunpack.c.l.b16 %v945
    %v1136 = vunpack.c.h.b16 %v945
    %v1137 = vunpack.c.l.b16 %v946
    %v1138 = vunpack.c.h.b16 %v946
    %v1139 = vunpack.c.l.b16 %v947
    %v1140 = vunpack.c.h.b16 %v947
    %v1141 = vunpack.c.l.b16 %v948
    %v1142 = vunpack.c.h.b16 %v948
    %v1143 = vunpack.c.l.b16 %v949
    %v1144 = vunpack.c.h.b16 %v949
    %v1145 = vunpack.c.l.b16 %v950
    %v1146 = vunpack.c.h.b16 %v950
    %v1147 = vunpack.c.l.b16 %v951
    %v1148 = vunpack.c.h.b16 %v951
    %v1149 = vunpack.c.l.b16 %v952
    %v1150 = vunpack.c.h.b16 %v952
    %v1151 = vunpack.c.l.b16 %v953
    %v1152 = vunpack.c.h.b16 %v953
    %v1153 = vunpack.c.l.b16 %v954
    %v1154 = vunpack.c.h.b16 %v954
    %v1155 = vunpack.c.l.b16 %v955
    %v1156 = vunpack.c.h.b16 %v955
    %v1157 = vunpack.c.l.b16 %v956
    %v1158 = vunpack.c.h.b16 %v956
    %v1159 = vunpack.c.l.b16 %v957
    %v1160 = vunpack.c.h.b16 %v957
    %v1161 = vunpack.c.l.b16 %v958
    %v1162 = vunpack.c.h.b16 %v958
    %v1163 = vpack.c.b16 %v1037, %v1035
    %v1164 = vpack.c.b16 %v1038, %v1036
    %v1165 = vpack.c.b16 %v1041, %v1039
    %v1166 = vpack.c.b16 %v1042, %v1040
    %v1167 = vpack.c.b16 %v1045, %v1043
    %v1168 = vpack.c.b16 %v1046, %v1044
    %v1169 = vpack.c.b16 %v1049, %v1047
    %v1170 = vpack.c.b16 %v1050, %v1048
    %v1171 = vpack.c.b16 %v1053, %v1051
    %v1172 = vpack.c.b16 %v1054, %v1052
    %v1173 = vpack.c.b16 %v1057, %v1055
    %v1174 = vpack.c.b16 %v1058, %v1056
    %v1175 = vpack.c.b16 %v1061, %v1059
    %v1176 = vpack.c.b16 %v1062, %v1060
    %v1177 = vpack.c.b16 %v1065, %v1063
    %v1178 = vpack.c.b16 %v1066, %v1064
    %v1179 = vpack.c.b16 %v1069, %v1067
    %v1180 = vpack.c.b16 %v1070, %v1068
    %v1181 = vpack.c.b16 %v1073, %v1071
    %v1182 = vpack.c.b16 %v1074, %v1072
    %v1183 = vpack.c.b16 %v1077, %v1075
    %v1184 = vpack.c.b16 %v1078, %v1076
    %v1185 = vpack.c.b16 %v1081, %v1079
    %v1186 = vpack.c.b16 %v1082, %v1080
    %v1187 = vpack.c.b16 %v1085, %v1083
    %v1188 = vpack.c.b16 %v1086, %v1084
    %v1189 = vpack.c.b16 %v1089, %v1087
    %v1190 = vpack.c.b16 %v1090, %v1088
    %v1191 = vpack.c.b16 %v1093, %v1091
    %v1192 = vpack.c.b16 %v1094, %v1092
    %v1193 = vpack.c.b16 %v1097, %v1095
    %v1194 = vpack.c.b16 %v1098, %v1096
    %v1195 = vpack.c.b16 %v1101, %v1099
    %v1196 = vpack.c.b16 %v1102, %v1100
    %v1197 = vpack.c.b16 %v1105, %v1103
    %v1198 = vpack.c.b16 %v1106, %v1104
    %v1199 = vpack.c.b16 %v1109, %v1107
    %v1200 = vpack.c.b16 %v1110, %v1108
    %v1201 = vpack.c.b16 %v1113, %v1111
    %v1202 = vpack.c.b16 %v1114, %v1112
    %v1203 = vpack.c.b16 %v1117, %v1115
    %v1204 = vpack.c.b16 %v1118, %v1116
    %v1205 = vpack.c.b16 %v1121, %v1119
    %v1206 = vpack.c.b16 %v1122, %v1120
    %v1207 = vpack.c.b16 %v1125, %v1123
    %v1208 = vpack.c.b16 %v1126, %v1124
    %v1209 = vpack.c.b16 %v1129, %v1127
    %v1210 = vpack.c.b16 %v1130, %v1128
    %v1211 = vpack.c.b16 %v1133, %v1131
    %v1212 = vpack.c.b16 %v1134, %v1132
    %v1213 = vpack.c.b16 %v1137, %v1135
    %v1214 = vpack.c.b16 %v1138, %v1136
    %v1215 = vpack.c.b16 %v1141, %v1139
    %v1216 = vpack.c.b16 %v1142, %v1140
    %v1217 = vpack.c.b16 %v1145, %v1143
    %v1218 = vpack.c.b16 %v1146, %v1144
    %v1219 = vpack.c.b16 %v1149, %v1147
    %v1220 = vpack.c.b16 %v1150, %v1148
    %v1221 = vpack.c.b16 %v1153, %v1151
    %v1222 = vpack.c.b16 %v1154, %v1152
    %v1223 = vpack.c.b16 %v1157, %v1155
    %v1224 = vpack.c.b16 %v1158, %v1156
    %v1225 = vpack.c.b16 %v1161, %v1159
    %v1226 = vpack.c.b16 %v1162, %v1160
    %1291 = vmatprep.subr.bf16.mxu0 %v1164
    %1292 = vmatpush1.bf16.msra.mxu0 %v1163
    %1293 = vmatprep.subr.bf16.mxu0 %v1166
    %1294 = vmatpush1.bf16.msra.mxu0 %v1165
    %1295 = vmatprep.subr.bf16.mxu0 %v1168
    %1296 = vmatpush1.bf16.msra.mxu0 %v1167
    %1297 = vmatprep.subr.bf16.mxu0 %v1170
    %1298 = vmatpush1.bf16.msra.mxu0 %v1169
    %1299 = vmatprep.subr.bf16.mxu0 %v1172
    %1300 = vmatpush1.bf16.msra.mxu0 %v1171
    %1301 = vmatprep.subr.bf16.mxu0 %v1174
    %1302 = vmatpush1.bf16.msra.mxu0 %v1173
    %1303 = vmatprep.subr.bf16.mxu0 %v1176
    %1304 = vmatpush1.bf16.msra.mxu0 %v1175
    %1305 = vmatprep.subr.bf16.mxu0 %v1178
    %1306 = vmatpush1.bf16.msra.mxu0 %v1177
    %1307 = vmatprep.subr.bf16.mxu0 %v1180
    %1308 = vmatpush1.bf16.msra.mxu0 %v1179
    %1309 = vmatprep.subr.bf16.mxu0 %v1182
    %1310 = vmatpush1.bf16.msra.mxu0 %v1181
    %1311 = vmatprep.subr.bf16.mxu0 %v1184
    %1312 = vmatpush1.bf16.msra.mxu0 %v1183
    %1313 = vmatprep.subr.bf16.mxu0 %v1186
    %1314 = vmatpush1.bf16.msra.mxu0 %v1185
    %1315 = vmatprep.subr.bf16.mxu0 %v1188
    %1316 = vmatpush1.bf16.msra.mxu0 %v1187
    %1317 = vmatprep.subr.bf16.mxu0 %v1190
    %1318 = vmatpush1.bf16.msra.mxu0 %v1189
    %1319 = vmatprep.subr.bf16.mxu0 %v1192
    %1320 = vmatpush1.bf16.msra.mxu0 %v1191
    %1321 = vmatprep.subr.bf16.mxu0 %v1194
    %1322 = vmatpush1.bf16.msra.mxu0 %v1193
    %1323 = vmatprep.mubr.bf16.mxu0 %v892
    %1324 = vmatmul.mubr.bf16.gmra.mrb[0].mxu0 %v891
    %v1325 = vpop.f32.mrb[0].mxu0
    %v1326 = vadd.f32 %v964, %v1325
    %v1327 = vpop.f32.mrb[0].mxu0
    %v1328 = vadd.f32 %v968, %v1327
    %v1329 = vpop.f32.mrb[0].mxu0
    %v1330 = vadd.f32 %v964, %v1329
    %v1331 = vpop.f32.mrb[0].mxu0
    %v1332 = vadd.f32 %v968, %v1331
    %1333 = vdwg.mxu0
    %1334 = vmatprep.subr.bf16.mxu0 %v1196
    %1335 = vmatpush1.bf16.msra.mxu0 %v1195
    %1336 = vmatprep.subr.bf16.mxu0 %v1198
    %1337 = vmatpush1.bf16.msra.mxu0 %v1197
    %1338 = vmatprep.subr.bf16.mxu0 %v1200
    %1339 = vmatpush1.bf16.msra.mxu0 %v1199
    %1340 = vmatprep.subr.bf16.mxu0 %v1202
    %1341 = vmatpush1.bf16.msra.mxu0 %v1201
    %1342 = vmatprep.subr.bf16.mxu0 %v1204
    %1343 = vmatpush1.bf16.msra.mxu0 %v1203
    %1344 = vmatprep.subr.bf16.mxu0 %v1206
    %1345 = vmatpush1.bf16.msra.mxu0 %v1205
    %1346 = vmatprep.subr.bf16.mxu0 %v1208
    %1347 = vmatpush1.bf16.msra.mxu0 %v1207
    %1348 = vmatprep.subr.bf16.mxu0 %v1210
    %1349 = vmatpush1.bf16.msra.mxu0 %v1209
    %1350 = vmatprep.subr.bf16.mxu0 %v1212
    %1351 = vmatpush1.bf16.msra.mxu0 %v1211
    %1352 = vmatprep.subr.bf16.mxu0 %v1214
    %1353 = vmatpush1.bf16.msra.mxu0 %v1213
    %1354 = vmatprep.subr.bf16.mxu0 %v1216
    %1355 = vmatpush1.bf16.msra.mxu0 %v1215
    %1356 = vmatprep.subr.bf16.mxu0 %v1218
    %1357 = vmatpush1.bf16.msra.mxu0 %v1217
    %1358 = vmatprep.subr.bf16.mxu0 %v1220
    %1359 = vmatpush1.bf16.msra.mxu0 %v1219
    %1360 = vmatprep.subr.bf16.mxu0 %v1222
    %1361 = vmatpush1.bf16.msra.mxu0 %v1221
    %1362 = vmatprep.subr.bf16.mxu0 %v1224
    %1363 = vmatpush1.bf16.msra.mxu0 %v1223
    %1364 = vmatprep.subr.bf16.mxu0 %v1226
    %1365 = vmatpush1.bf16.msra.mxu0 %v1225
    %1366 = vmatprep.mubr.bf16.mxu0 %v894
    %1367 = vmatmul.mubr.bf16.gmra.mrb[0].mxu0 %v893
    %v1368 = vpop.f32.mrb[0].mxu0
    %v1369 = vadd.f32 %v1326, %v1368
    %v1370 = vpop.f32.mrb[0].mxu0
    %v1371 = vadd.f32 %v1328, %v1370
    %v1372 = vpop.f32.mrb[0].mxu0
    %v1373 = vadd.f32 %v1330, %v1372
    %v1374 = vpop.f32.mrb[0].mxu0
    %v1375 = vadd.f32 %v1332, %v1374
    %1376 = vdwg.mxu0
    %v1377 = vmax.f32 %v1369, 0.0
    %v1378 = vmax.f32 %v1371, 0.0
    %v1379 = vmax.f32 %v1373, 0.0
    %v1380 = vmax.f32 %v1375, 0.0
    %v1381 = vpack.c.bf16 %v1379, %v1377
    %v1382 = vpack.c.bf16 %v1380, %v1378
    %v1383 = vld [vmem:[#allocation10] sm:$0xf]
    %v1384 = vld [vmem:[#allocation10 + $0x4] sm:$0xf]
    %v1385 = vld [vmem:[#allocation10 + $0x8] sm:$0xf]
    %v1386 = vld [vmem:[#allocation10 + $0xc] sm:$0xf]
    %v1387 = vld [vmem:[#allocation10 + $0x10] sm:$0xf]
    %v1388 = vld [vmem:[#allocation10 + $0x14] sm:$0xf]
    %v1389 = vld [vmem:[#allocation10 + $0x18] sm:$0xf]
    %v1390 = vld [vmem:[#allocation10 + $0x1c] sm:$0xf]
    %v1391 = vld [vmem:[#allocation10 + $0x20] sm:$0xf]
    %v1392 = vld [vmem:[#allocation10 + $0x24] sm:$0xf]
    %v1393 = vld [vmem:[#allocation10 + $0x28] sm:$0xf]
    %v1394 = vld [vmem:[#allocation10 + $0x2c] sm:$0xf]
    %v1395 = vld [vmem:[#allocation10 + $0x30] sm:$0xf]
    %v1396 = vld [vmem:[#allocation10 + $0x34] sm:$0xf]
    %v1397 = vld [vmem:[#allocation10 + $0x38] sm:$0xf]
    %v1398 = vld [vmem:[#allocation10 + $0x3c] sm:$0xf]
    %v1399 = vld [vmem:[#allocation10 + $0x40] sm:$0xf]
    %v1400 = vld [vmem:[#allocation10 + $0x44] sm:$0xf]
    %v1401 = vld [vmem:[#allocation10 + $0x48] sm:$0xf]
    %v1402 = vld [vmem:[#allocation10 + $0x4c] sm:$0xf]
    %v1403 = vld [vmem:[#allocation10 + $0x50] sm:$0xf]
    %v1404 = vld [vmem:[#allocation10 + $0x54] sm:$0xf]
    %v1405 = vld [vmem:[#allocation10 + $0x58] sm:$0xf]
    %v1406 = vld [vmem:[#allocation10 + $0x5c] sm:$0xf]
    %v1407 = vld [vmem:[#allocation10 + $0x60] sm:$0xf]
    %v1408 = vld [vmem:[#allocation10 + $0x64] sm:$0xf]
    %v1409 = vld [vmem:[#allocation10 + $0x68] sm:$0xf]
    %v1410 = vld [vmem:[#allocation10 + $0x6c] sm:$0xf]
    %v1411 = vld [vmem:[#allocation10 + $0x70] sm:$0xf]
    %v1412 = vld [vmem:[#allocation10 + $0x74] sm:$0xf]
    %v1413 = vld [vmem:[#allocation10 + $0x78] sm:$0xf]
    %v1414 = vld [vmem:[#allocation10 + $0x7c] sm:$0xf]
    %v1415 = vld [vmem:[%s10] sm:$0x1]
    %v1417 = vlaneseq
    %v1418 = vshrl.u32 %v1417, 7
    %v1419 = vsub.s32 0, %v1418
    %v1420 = vrot.slane %v1415, %v1419
    %v1454 = vunpack.c.l.b16 %v1383
    %v1455 = vunpack.c.l.b16 %v1384
    %v1456 = vunpack.c.l.b16 %v1385
    %v1457 = vunpack.c.l.b16 %v1386
    %v1458 = vunpack.c.l.b16 %v1387
    %v1459 = vunpack.c.l.b16 %v1388
    %v1460 = vunpack.c.l.b16 %v1389
    %v1461 = vunpack.c.l.b16 %v1390
    %v1462 = vunpack.c.l.b16 %v1391
    %v1463 = vunpack.c.l.b16 %v1392
    %v1464 = vunpack.c.l.b16 %v1393
    %v1465 = vunpack.c.l.b16 %v1394
    %v1466 = vunpack.c.l.b16 %v1395
    %v1467 = vunpack.c.l.b16 %v1396
    %v1468 = vunpack.c.l.b16 %v1397
    %v1469 = vunpack.c.l.b16 %v1398
    %v1470 = vunpack.c.l.b16 %v1399
    %v1471 = vunpack.c.l.b16 %v1400
    %v1472 = vunpack.c.l.b16 %v1401
    %v1473 = vunpack.c.l.b16 %v1402
    %v1474 = vunpack.c.l.b16 %v1403
    %v1475 = vunpack.c.l.b16 %v1404
    %v1476 = vunpack.c.l.b16 %v1405
    %v1477 = vunpack.c.l.b16 %v1406
    %v1478 = vunpack.c.l.b16 %v1407
    %v1479 = vunpack.c.l.b16 %v1408
    %v1480 = vunpack.c.l.b16 %v1409
    %v1481 = vunpack.c.l.b16 %v1410
    %v1482 = vunpack.c.l.b16 %v1411
    %v1483 = vunpack.c.l.b16 %v1412
    %v1484 = vunpack.c.l.b16 %v1413
    %v1485 = vunpack.c.l.b16 %v1414
    %v1486 = vpack.c.b16 %v1455, %v1454
    %v1487 = vpack.c.b16 %v1457, %v1456
    %v1488 = vpack.c.b16 %v1459, %v1458
    %v1489 = vpack.c.b16 %v1461, %v1460
    %v1490 = vpack.c.b16 %v1463, %v1462
    %v1491 = vpack.c.b16 %v1465, %v1464
    %v1492 = vpack.c.b16 %v1467, %v1466
    %v1493 = vpack.c.b16 %v1469, %v1468
    %v1494 = vpack.c.b16 %v1471, %v1470
    %v1495 = vpack.c.b16 %v1473, %v1472
    %v1496 = vpack.c.b16 %v1475, %v1474
    %v1497 = vpack.c.b16 %v1477, %v1476
    %v1498 = vpack.c.b16 %v1479, %v1478
    %v1499 = vpack.c.b16 %v1481, %v1480
    %v1500 = vpack.c.b16 %v1483, %v1482
    %v1501 = vpack.c.b16 %v1485, %v1484
    %1518 = vmatprep.subr.bf16.mxu0 0
    %1519 = vmatpush1.bf16.msra.mxu0 %v1486
    %1520 = vmatprep.subr.bf16.mxu0 0
    %1521 = vmatpush1.bf16.msra.mxu0 %v1487
    %1522 = vmatprep.subr.bf16.mxu0 0
    %1523 = vmatpush1.bf16.msra.mxu0 %v1488
    %1524 = vmatprep.subr.bf16.mxu0 0
    %1525 = vmatpush1.bf16.msra.mxu0 %v1489
    %1526 = vmatprep.subr.bf16.mxu0 0
    %1527 = vmatpush1.bf16.msra.mxu0 %v1490
    %1528 = vmatprep.subr.bf16.mxu0 0
    %1529 = vmatpush1.bf16.msra.mxu0 %v1491
    %1530 = vmatprep.subr.bf16.mxu0 0
    %1531 = vmatpush1.bf16.msra.mxu0 %v1492
    %1532 = vmatprep.subr.bf16.mxu0 0
    %1533 = vmatpush1.bf16.msra.mxu0 %v1493
    %1534 = vmatprep.subr.bf16.mxu0 0
    %1535 = vmatpush1.bf16.msra.mxu0 %v1494
    %1536 = vmatprep.subr.bf16.mxu0 0
    %1537 = vmatpush1.bf16.msra.mxu0 %v1495
    %1538 = vmatprep.subr.bf16.mxu0 0
    %1539 = vmatpush1.bf16.msra.mxu0 %v1496
    %1540 = vmatprep.subr.bf16.mxu0 0
    %1541 = vmatpush1.bf16.msra.mxu0 %v1497
    %1542 = vmatprep.subr.bf16.mxu0 0
    %1543 = vmatpush1.bf16.msra.mxu0 %v1498
    %1544 = vmatprep.subr.bf16.mxu0 0
    %1545 = vmatpush1.bf16.msra.mxu0 %v1499
    %1546 = vmatprep.subr.bf16.mxu0 0
    %1547 = vmatpush1.bf16.msra.mxu0 %v1500
    %1548 = vmatprep.subr.bf16.mxu0 0
    %1549 = vmatpush1.bf16.msra.mxu0 %v1501
    %1550 = vmatprep.mubr.bf16.mxu0 %v1382
    %1551 = vmatmul.mubr.bf16.gmra.mrb[0].mxu0 %v1381
    %v1552 = vpop.f32.mrb[0].mxu0
    %v1553 = vadd.f32 %v1420, %v1552
    %v1554 = vpop.f32.mrb[0].mxu0
    %v1555 = vpop.f32.mrb[0].mxu0
    %v1556 = vadd.f32 %v1420, %v1555
    %v1557 = vpop.f32.mrb[0].mxu0
    %1558 = vdwg.mxu0
    %v1559 = vmax.f32 %v1553, 0.0
    %v1560 = vmax.f32 %v1556, 0.0
    %v1561 = vpack.c.bf16 %v1560, %v1559
    %v1562 = vld [vmem:[#allocation12] sm:$0xf]
    %v1563 = vld [vmem:[#allocation12 + $0x4] sm:$0xf]
    %v1564 = vld [vmem:[#allocation12 + $0x8] sm:$0xf]
    %v1565 = vld [vmem:[#allocation12 + $0xc] sm:$0xf]
    %v1566 = vld [vmem:[#allocation12 + $0x10] sm:$0xf]
    %v1567 = vld [vmem:[#allocation12 + $0x14] sm:$0xf]
    %v1568 = vld [vmem:[#allocation12 + $0x18] sm:$0xf]
    %v1569 = vld [vmem:[#allocation12 + $0x1c] sm:$0xf]
    %v1570 = vld [vmem:[#allocation12 + $0x20] sm:$0xf]
    %v1571 = vld [vmem:[#allocation12 + $0x24] sm:$0xf]
    %v1572 = vld [vmem:[#allocation12 + $0x28] sm:$0xf]
    %v1573 = vld [vmem:[#allocation12 + $0x2c] sm:$0xf]
    %v1574 = vld [vmem:[#allocation12 + $0x30] sm:$0xf]
    %v1575 = vld [vmem:[#allocation12 + $0x34] sm:$0xf]
    %v1576 = vld [vmem:[#allocation12 + $0x38] sm:$0xf]
    %v1577 = vld [vmem:[#allocation12 + $0x3c] sm:$0xf]
    %v1578 = vld [vmem:[%s12] sm:$0x1]
    %v1580 = vlaneseq
    %v1581 = vshrl.u32 %v1580, 7
    %v1582 = vsub.s32 0, %v1581
    %v1583 = vrot.slane %v1578, %v1582
    %v1601 = vunpack.c.l.b16 %v1562
    %v1602 = vunpack.c.l.b16 %v1563
    %v1603 = vunpack.c.l.b16 %v1564
    %v1604 = vunpack.c.l.b16 %v1565
    %v1605 = vunpack.c.l.b16 %v1566
    %v1606 = vunpack.c.l.b16 %v1567
    %v1607 = vunpack.c.l.b16 %v1568
    %v1608 = vunpack.c.l.b16 %v1569
    %v1609 = vunpack.c.l.b16 %v1570
    %v1610 = vunpack.c.l.b16 %v1571
    %v1611 = vunpack.c.l.b16 %v1572
    %v1612 = vunpack.c.l.b16 %v1573
    %v1613 = vunpack.c.l.b16 %v1574
    %v1614 = vunpack.c.l.b16 %v1575
    %v1615 = vunpack.c.l.b16 %v1576
    %v1616 = vunpack.c.l.b16 %v1577
    %v1617 = vpack.c.b16 %v1602, %v1601
    %v1618 = vpack.c.b16 %v1604, %v1603
    %v1619 = vpack.c.b16 %v1606, %v1605
    %v1620 = vpack.c.b16 %v1608, %v1607
    %v1621 = vpack.c.b16 %v1610, %v1609
    %v1622 = vpack.c.b16 %v1612, %v1611
    %v1623 = vpack.c.b16 %v1614, %v1613
    %v1624 = vpack.c.b16 %v1616, %v1615
    %1633 = vmatprep.subr.bf16.mxu0 0
    %1634 = vmatpush1.bf16.msra.mxu0 %v1617
    %1635 = vmatprep.subr.bf16.mxu0 0
    %1636 = vmatpush1.bf16.msra.mxu0 %v1618
    %1637 = vmatprep.subr.bf16.mxu0 0
    %1638 = vmatpush1.bf16.msra.mxu0 %v1619
    %1639 = vmatprep.subr.bf16.mxu0 0
    %1640 = vmatpush1.bf16.msra.mxu0 %v1620
    %1641 = vmatprep.subr.bf16.mxu0 0
    %1642 = vmatpush1.bf16.msra.mxu0 %v1621
    %1643 = vmatprep.subr.bf16.mxu0 0
    %1644 = vmatpush1.bf16.msra.mxu0 %v1622
    %1645 = vmatprep.subr.bf16.mxu0 0
    %1646 = vmatpush1.bf16.msra.mxu0 %v1623
    %1647 = vmatprep.subr.bf16.mxu0 0
    %1648 = vmatpush1.bf16.msra.mxu0 %v1624
    %1649 = vmatprep.subr.bf16.mxu0 0
    %1650 = vmatpush1.bf16.msra.mxu0 0
    %1651 = vmatprep.subr.bf16.mxu0 0
    %1652 = vmatpush1.bf16.msra.mxu0 0
    %1653 = vmatprep.subr.bf16.mxu0 0
    %1654 = vmatpush1.bf16.msra.mxu0 0
    %1655 = vmatprep.subr.bf16.mxu0 0
    %1656 = vmatpush1.bf16.msra.mxu0 0
    %1657 = vmatprep.subr.bf16.mxu0 0
    %1658 = vmatpush1.bf16.msra.mxu0 0
    %1659 = vmatprep.subr.bf16.mxu0 0
    %1660 = vmatpush1.bf16.msra.mxu0 0
    %1661 = vmatprep.subr.bf16.mxu0 0
    %1662 = vmatpush1.bf16.msra.mxu0 0
    %1663 = vmatprep.subr.bf16.mxu0 0
    %1664 = vmatpush1.bf16.msra.mxu0 0
    %1665 = vmatprep.mubr.bf16.mxu0 0
    %1666 = vmatmul.mubr.bf16.gmra.mrb[0].mxu0 %v1561
    %v1667 = vpop.f32.mrb[0].mxu0
    %v1668 = vadd.f32 %v1583, %v1667
    %v1669 = vpop.f32.mrb[0].mxu0
    %v1670 = vpop.f32.mrb[0].mxu0
    %v1671 = vadd.f32 %v1583, %v1670
    %v1672 = vpop.f32.mrb[0].mxu0
    %1673 = vdwg.mxu0
    %v1674 = vmax.f32 %v1668, 0.0
    %v1675 = vmax.f32 %v1671, 0.0
    %v1676 = vpack.c.bf16 %v1675, %v1674
    %v1677 = vld [vmem:[#allocation13] sm:$0xf]
    %v1678 = vld [vmem:[#allocation13 + $0x4] sm:$0xf]
    %v1679 = vld [vmem:[#allocation13 + $0x8] sm:$0xf]
    %v1680 = vld [vmem:[#allocation13 + $0xc] sm:$0xf]
    %v1681 = vld [vmem:[#allocation13 + $0x10] sm:$0xf]
    %v1682 = vld [vmem:[#allocation13 + $0x14] sm:$0xf]
    %v1683 = vld [vmem:[#allocation13 + $0x18] sm:$0xf]
    %v1684 = vld [vmem:[#allocation13 + $0x1c] sm:$0xf]
    %v1685 = vld [vmem:[#allocation13 + $0x20] sm:$0xf]
    %v1686 = vld [vmem:[#allocation13 + $0x24] sm:$0xf]
    %v1687 = vld [vmem:[#allocation13 + $0x28] sm:$0xf]
    %v1688 = vld [vmem:[#allocation13 + $0x2c] sm:$0xf]
    %v1689 = vld [vmem:[#allocation13 + $0x30] sm:$0xf]
    %v1690 = vld [vmem:[#allocation13 + $0x34] sm:$0xf]
    %v1691 = vld [vmem:[#allocation13 + $0x38] sm:$0xf]
    %v1692 = vld [vmem:[#allocation13 + $0x3c] sm:$0xf]
    %v1693 = vld [vmem:[%s14] sm:$0x1]
    %v1695 = vlaneseq
    %v1696 = vshrl.u32 %v1695, 7
    %v1697 = vsub.s32 0, %v1696
    %v1698 = vrot.slane %v1693, %v1697
    %v1716 = vunpack.c.l.b16 %v1677
    %v1717 = vunpack.c.l.b16 %v1678
    %v1718 = vunpack.c.l.b16 %v1679
    %v1719 = vunpack.c.l.b16 %v1680
    %v1720 = vunpack.c.l.b16 %v1681
    %v1721 = vunpack.c.l.b16 %v1682
    %v1722 = vunpack.c.l.b16 %v1683
    %v1723 = vunpack.c.l.b16 %v1684
    %v1724 = vunpack.c.l.b16 %v1685
    %v1725 = vunpack.c.l.b16 %v1686
    %v1726 = vunpack.c.l.b16 %v1687
    %v1727 = vunpack.c.l.b16 %v1688
    %v1728 = vunpack.c.l.b16 %v1689
    %v1729 = vunpack.c.l.b16 %v1690
    %v1730 = vunpack.c.l.b16 %v1691
    %v1731 = vunpack.c.l.b16 %v1692
    %v1732 = vpack.c.b16 %v1717, %v1716
    %v1733 = vpack.c.b16 %v1719, %v1718
    %v1734 = vpack.c.b16 %v1721, %v1720
    %v1735 = vpack.c.b16 %v1723, %v1722
    %v1736 = vpack.c.b16 %v1725, %v1724
    %v1737 = vpack.c.b16 %v1727, %v1726
    %v1738 = vpack.c.b16 %v1729, %v1728
    %v1739 = vpack.c.b16 %v1731, %v1730
    %1748 = vmatprep.subr.bf16.mxu0 0
    %1749 = vmatpush1.bf16.msra.mxu0 %v1732
    %1750 = vmatprep.subr.bf16.mxu0 0
    %1751 = vmatpush1.bf16.msra.mxu0 %v1733
    %1752 = vmatprep.subr.bf16.mxu0 0
    %1753 = vmatpush1.bf16.msra.mxu0 %v1734
    %1754 = vmatprep.subr.bf16.mxu0 0
    %1755 = vmatpush1.bf16.msra.mxu0 %v1735
    %1756 = vmatprep.subr.bf16.mxu0 0
    %1757 = vmatpush1.bf16.msra.mxu0 %v1736
    %1758 = vmatprep.subr.bf16.mxu0 0
    %1759 = vmatpush1.bf16.msra.mxu0 %v1737
    %1760 = vmatprep.subr.bf16.mxu0 0
    %1761 = vmatpush1.bf16.msra.mxu0 %v1738
    %1762 = vmatprep.subr.bf16.mxu0 0
    %1763 = vmatpush1.bf16.msra.mxu0 %v1739
    %1764 = vmatprep.subr.bf16.mxu0 0
    %1765 = vmatpush1.bf16.msra.mxu0 0
    %1766 = vmatprep.subr.bf16.mxu0 0
    %1767 = vmatpush1.bf16.msra.mxu0 0
    %1768 = vmatprep.subr.bf16.mxu0 0
    %1769 = vmatpush1.bf16.msra.mxu0 0
    %1770 = vmatprep.subr.bf16.mxu0 0
    %1771 = vmatpush1.bf16.msra.mxu0 0
    %1772 = vmatprep.subr.bf16.mxu0 0
    %1773 = vmatpush1.bf16.msra.mxu0 0
    %1774 = vmatprep.subr.bf16.mxu0 0
    %1775 = vmatpush1.bf16.msra.mxu0 0
    %1776 = vmatprep.subr.bf16.mxu0 0
    %1777 = vmatpush1.bf16.msra.mxu0 0
    %1778 = vmatprep.subr.bf16.mxu0 0
    %1779 = vmatpush1.bf16.msra.mxu0 0
    %1780 = vmatprep.mubr.bf16.mxu0 0
    %1781 = vmatmul.mubr.bf16.gmra.mrb[0].mxu0 %v1676
    %v1782 = vpop.f32.mrb[0].mxu0
    %v1783 = vadd.f32 %v1698, %v1782
    %v1784 = vpop.f32.mrb[0].mxu0
    %v1785 = vpop.f32.mrb[0].mxu0
    %v1786 = vadd.f32 %v1698, %v1785
    %v1787 = vpop.f32.mrb[0].mxu0
    %1788 = vdwg.mxu0
    %v1789 = vsub.f32 0.0, %v1783
    %v1790 = vsub.f32 0.0, %v1786
    %v1791 = vmul.f32 %v1789, 1.442695
    %v1792 = vpow.pop %v1791
    %v1793 = vmul.f32 %v1790, 1.442695
    %v1794 = vpow.pop %v1793
    %v1795 = vadd.f32 %v1792, 1.0
    %v1796 = vadd.f32 %v1794, 1.0
    %v1797 = vrcp.pop %v1795
    %v1798 = vrcp.pop %v1796
    %vm1799 = vcmask 7168
    %1800 = vst.msk [vmem:[%s15] sm:$0xff] %vm1799, %v1797
    %1801 = vst.msk [vmem:[%s15 + $0x8] sm:$0xff] %vm1799, %v1798
    // Predicated region
    $region94: #{tpu_custom_call.1} parent=1 // pred_check
      _
    $region95: #{tpu_custom_call.1} parent=1 // pred_check_branch
      %1803 = sbr.rel (0) target = $region97
    $region96: #{tpu_custom_call.1} parent=1 // pred_region
      _
    $region97: #{tpu_custom_call.1} parent=1 // pred_fallthru
      _
    // Predicated region
    $region98: #{tpu_custom_call.1} parent=1 // pred_check
      _
    $region99: #{tpu_custom_call.1} parent=1 // pred_check_branch
      %1805 = sbr.rel (0) target = $region101
    $region100: #{tpu_custom_call.1} parent=1 // pred_region
      _
    $region101: #{tpu_custom_call.1} parent=1 // pred_fallthru
      _
    %1806 = vsyncpa [#allocation3], 1
    %1807 = vsyncpa [#allocation5], 1
    %1808 = vsyncpa [#allocation8], 1
    %1809 = vsyncpa [#allocation11], 1
    %1810 = vsyncpa [#allocation14], 1

</llo_original>
